<compile_context>
chip_gen: v6e
topology: v6e:2x2x1
jax: 0.10.0
libtpu: 0.0.40
codegen_flags: <defaults>
</compile_context>

<pallas_src>
from functools import partial
from typing import Any, Dict, List, Optional

import jax
import jax.numpy as jnp
from jax.experimental import pallas as pl
from jax.experimental.pallas import tpu as pltpu


def _round_up(a: int, b: int) -> int:
    return (a + b - 1) // b * b


# ----------------------------------------------------------------------------
# Fused kernel: all DeltaModels + (optional) ensemble wNN for one row tile.
#
#   h_cat   = tanh(x @ W1_cat + b1_cat)              one MXU op, (M+1)*H wide
#   z2      = h_cat @ W2_blk + b2_cat                one MXU op (block-diag)
#   params  = sigmoid(z2[:, :M*P])
#   flow_m  = sum_p(params_m * coef_m) * x[:, 0]      (physics surrogate)
#   weights = softmax(z2[:, M*P:M*P+M])               (wNN, pnn_parallel only)
#   ens     = sum_m weights[:, m] * flow_m
#
# Output: one lane-dense [tile, out_w] bf16 slab, written with a single store:
#   cols [0, M*P)                : params, model-major
#   cols [M*P, M*P+M)            : per-model flow
#   cols [M*P+M, M*P+2M)         : ensemble weights        (wNN only)
#   col   M*P+2M                 : ensemble flow            (wNN only)
#   remaining cols               : zero padding to a 128 multiple
# ----------------------------------------------------------------------------
def _fused_delta_ensemble_kernel(x_ref, w1_ref, b1_ref, w2_ref, b2_ref,
                                 coef_ref, out_ref, *,
                                 n_models: int, n_params: int,
                                 has_wnn: bool, out_w: int):
    x_f32 = x_ref[...]                                   # [tn, F]  f32 (native)
    x_bf = x_f32.astype(jnp.bfloat16)                    # MXU operand
    x0 = x_f32[:, 0:1]                                   # f32 physics forcing

    # Layer 1: one fused matmul over all models (+ wNN) -> [tn, (M+wnn)*H]
    h = jnp.tanh(
        jnp.dot(x_bf, w1_ref[...], preferred_element_type=jnp.float32)
        + b1_ref[...])

    # Layer 2: one block-diagonal matmul -> [tn, M*P (+ M)]
    z2 = (jnp.dot(h.astype(jnp.bfloat16), w2_ref[...],
                  preferred_element_type=jnp.float32) + b2_ref[...])

    mp = n_models * n_params
    params = jax.nn.sigmoid(z2[:, :mp])                  # [tn, M*P] f32

    # Physics surrogate: flow_m = sum_p(params_m * coef_m) * x0
    pf = params * coef_ref[...]                          # coef_ref [1, M*P]
    sums = [jnp.sum(pf[:, m * n_params:(m + 1) * n_params],
                    axis=-1, keepdims=True) for m in range(n_models)]
    flows = jnp.concatenate(sums, axis=-1) * x0          # [tn, M]

    pieces = [params, flows]
    if has_wnn:
        logits = z2[:, mp:mp + n_models]
        mx = jnp.max(logits, axis=-1, keepdims=True)
        e = jnp.exp(logits - mx)
        inv = pl.reciprocal(jnp.sum(e, axis=-1, keepdims=True), approx=True)
        wts = e * inv                                    # [tn, M]
        ens = jnp.sum(wts * flows, axis=-1, keepdims=True)
        pieces += [wts, ens]

    used = mp + n_models + (n_models + 1 if has_wnn else 0)
    if out_w > used:
        pieces.append(jnp.zeros((x_f32.shape[0], out_w - used), jnp.float32))

    # ONE dense, unmasked, full-width store of the whole slab.
    out_ref[...] = jnp.concatenate(pieces, axis=-1).astype(out_ref.dtype)


def fused_forward(x_flat: jnp.ndarray,
                  w1_cat: jnp.ndarray, b1_cat: jnp.ndarray,
                  w2_blk: jnp.ndarray, b2_cat: jnp.ndarray,
                  coef_cat: jnp.ndarray,
                  *, n_models: int, n_params: int, has_wnn: bool,
                  tile_n: int = 4096) -> jnp.ndarray:
    """Run the fused DeltaModel(+wNN) kernel. Returns the packed [N, out_w] slab."""
    n, f = x_flat.shape
    hc = w1_cat.shape[1]
    n2 = w2_blk.shape[1]

    used = n_models * n_params + n_models + (n_models + 1 if has_wnn else 0)
    out_w = _round_up(used, 128)                         # lane-dense output width

    # Row tile: full array if small, else a multiple of 16 (bf16 sublane pack).
    # Ragged tail handled by Pallas partial blocks (no wrapper-side pad).
    if n <= tile_n:
        tile = n
    else:
        tile = max(16, (tile_n // 16) * 16)
    grid = pl.cdiv(n, tile)

    kernel = partial(_fused_delta_ensemble_kernel,
                     n_models=n_models, n_params=n_params,
                     has_wnn=has_wnn, out_w=out_w)

    packed = pl.pallas_call(
        kernel,
        out_shape=jax.ShapeDtypeStruct((n, out_w), jnp.bfloat16),
        grid_spec=pltpu.PrefetchScalarGridSpec(
            num_scalar_prefetch=0,
            grid=(grid,),
            in_specs=[
                pl.BlockSpec((tile, f), lambda i: (i, 0)),
                # constant block index -> weights DMA'd once, stay resident
                pl.BlockSpec((f, hc), lambda i: (0, 0)),
                pl.BlockSpec((1, hc), lambda i: (0, 0)),
                pl.BlockSpec((hc, n2), lambda i: (0, 0)),
                pl.BlockSpec((1, n2), lambda i: (0, 0)),
                pl.BlockSpec((1, n_models * n_params), lambda i: (0, 0)),
            ],
            out_specs=pl.BlockSpec((tile, out_w), lambda i: (i, 0)),
        ),
        compiler_params=pltpu.CompilerParams(
            dimension_semantics=("parallel",),           # shard row tiles (v7x 2 TCs)
            vmem_limit_bytes=32 * 1024 * 1024),          # safe on v5e/v6e/v7x
    )(x_flat, w1_cat, b1_cat, w2_blk, b2_cat, coef_cat)
    return packed


# ----------------------------------------------------------------------------
# ModelHandler (JAX/Pallas version)
# ----------------------------------------------------------------------------
class ModelHandlerPallas:
    """Pallas re-implementation of ModelHandler's forward pass.

    Holds a dict of DeltaModels (weights for the fused Pallas kernel),
    optionally an ensemble generator ('wNN'), and a forward() returning a
    dict keyed by model name (mirroring the PyTorch module).
    """

    def __init__(self, config: Dict[str, Any], device=None, verbose=False):
        self.config = config
        self.name = "Differentiable Model Handler"
        self.save_path = config["out_path"]
        self.verbose = verbose
        self.is_ensemble = False
        self.device = device or config["device"]
        self.multimodel_type = config["multimodel_type"]
        self.model_dict: Dict[str, Dict[str, jnp.ndarray]] = {}
        self.models = self.list_models()
        self._init_models()
        self.loss_dict = {key: 0.0 for key in self.models}
        self.target_name = config["train"]["target"][0]
        self.tile_n = 4096                                   # tuned row tile
        if self.multimodel_type in ["pnn_parallel"]:
            self.is_ensemble = True
            self.weights: Dict[str, jnp.ndarray] = {}
        # TODO(synk): RangeBoundLoss / calc_loss bookkeeping not implemented
        #             (training-only, no Pallas equivalent needed for forward).

    # ---- configuration mirroring --------------------------------------
    def list_models(self) -> List[str]:
        models = list(self.config["dpl_model"]["phy_model"]["model"])
        if self.multimodel_type in ["pnn_parallel"]:
            models.append("wNN")
        return models

    def _init_models(self) -> None:
        if self.multimodel_type is None and len(self.models) > 1:
            raise ValueError("Multiple models specified, but ensemble type is "
                             "'none'. Check configuration.")
        # epoch==0 -> fresh (deterministic) parameter init; no checkpoint I/O.
        self.load_model(epoch=0)

    def load_model(self, epoch: int = 0) -> None:
        cfg = self.config["dpl_model"]
        f = cfg["nn_model"]["input_size"]
        h = cfg["nn_model"]["hidden_size"]
        p = cfg["phy_model"]["n_params"]
        for idx, name in enumerate(self.models):
            key = jax.random.PRNGKey(idx + 1)
            if name == "wNN":
                m = len(self.models) - 1
                k1, k2 = jax.random.split(key)
                self.ensemble_generator = {
                    "w1": 0.1 * jax.random.normal(k1, (f, h), jnp.float32),
                    "b1": jnp.zeros((1, h), jnp.float32),
                    "w2": 0.1 * jax.random.normal(k2, (h, m), jnp.float32),
                    "b2": jnp.zeros((1, m), jnp.float32),
                }
            else:
                k1, k2, k3 = jax.random.split(key, 3)
                self.model_dict[name] = {
                    "w1": 0.1 * jax.random.normal(k1, (f, h), jnp.float32),
                    "b1": jnp.zeros((1, h), jnp.float32),
                    "w2": 0.1 * jax.random.normal(k2, (h, p), jnp.float32),
                    "b2": jnp.zeros((1, p), jnp.float32),
                    "coef": jax.random.uniform(k3, (1, p), jnp.float32),
                }
            # TODO(synk): checkpoint loading (epoch > 0) deliberately omitted.

    def get_parameters(self) -> List[jnp.ndarray]:
        params = []
        for model in self.model_dict.values():
            params += list(model.values())
        if self.multimodel_type in ["pnn_parallel"]:
            params += list(self.ensemble_generator.values())
        return params

    # ---- weight packing for the fused kernel ---------------------------
    def _pack_weights(self, model_names: List[str]):
        """Concatenate per-model weights into the fused-kernel matrices.

        W1_cat : [F, (M+wnn)*H]   bf16   (one first-layer matmul)
        W2_blk : [(M+wnn)*H, M*P (+M)] bf16 block-diagonal (one second-layer matmul)
        b1_cat, b2_cat, coef_cat : f32 row vectors
        """
        h = self.config["dpl_model"]["nn_model"]["hidden_size"]
        p = self.config["dpl_model"]["phy_model"]["n_params"]
        m = len(model_names)
        has_wnn = self.is_ensemble

        w1_list = [self.model_dict[n]["w1"] for n in model_names]
        b1_list = [self.model_dict[n]["b1"] for n in model_names]
        if has_wnn:
            w1_list.append(self.ensemble_generator["w1"])
            b1_list.append(self.ensemble_generator["b1"])
        w1_cat = jnp.concatenate(w1_list, axis=1).astype(jnp.bfloat16)
        b1_cat = jnp.concatenate(b1_list, axis=1)

        hc = (m + (1 if has_wnn else 0)) * h
        n2 = m * p + (m if has_wnn else 0)
        w2_blk = jnp.zeros((hc, n2), jnp.float32)
        b2_parts = []
        for i, name in enumerate(model_names):
            w2_blk = w2_blk.at[i * h:(i + 1) * h,
                               i * p:(i + 1) * p].set(self.model_dict[name]["w2"])
            b2_parts.append(self.model_dict[name]["b2"])
        if has_wnn:
            w2_blk = w2_blk.at[m * h:, m * p:].set(self.ensemble_generator["w2"])
            b2_parts.append(self.ensemble_generator["b2"])
        w2_blk = w2_blk.astype(jnp.bfloat16)
        b2_cat = jnp.concatenate(b2_parts, axis=1)

        coef_cat = jnp.concatenate(
            [self.model_dict[n]["coef"] for n in model_names], axis=1)
        return w1_cat, b1_cat, w2_blk, b2_cat, coef_cat

    # ---- forward -------------------------------------------------------
    def forward(self, dataset_dict: Dict[str, jnp.ndarray],
                eval: bool = False) -> Dict[str, Dict[str, jnp.ndarray]]:
        x = dataset_dict["x_nn"]                  # [T, B, F] time-major
        t, b, f = x.shape
        x_flat = x.reshape(t * b, f)              # native f32; cast in-kernel

        model_names = list(self.model_dict.keys())
        n_models = len(model_names)
        p = self.config["dpl_model"]["phy_model"]["n_params"]

        w1_cat, b1_cat, w2_blk, b2_cat, coef_cat = self._pack_weights(model_names)

        packed = fused_forward(
            x_flat, w1_cat, b1_cat, w2_blk, b2_cat, coef_cat,
            n_models=n_models, n_params=p, has_wnn=self.is_ensemble,
            tile_n=self.tile_n)

        flow_base = n_models * p
        f32 = jnp.float32

        self.output_dict = {}
        for i, name in enumerate(model_names):
            self.output_dict[name] = {
                "streamflow": packed[:, flow_base + i:flow_base + i + 1]
                              .astype(f32).reshape(t, b, 1),
                "params": packed[:, i * p:(i + 1) * p]
                          .astype(f32).reshape(t, b, p),
            }

        if self.is_ensemble:
            wt_base = flow_base + n_models
            self.weights = {
                name: packed[:, wt_base + i:wt_base + i + 1]
                      .astype(f32).reshape(t, b, 1)
                for i, name in enumerate(model_names)}
            self.ensemble_output_dict = {
                self.target_name:
                    packed[:, wt_base + n_models:wt_base + n_models + 1]
                    .astype(f32).reshape(t, b, 1)}

        return self.output_dict

    __call__ = forward


# ----------------------------------------------------------------------------
# Pure-JAX (f32) reference for correctness checking
# ----------------------------------------------------------------------------
def _ref_forward(x_flat, model_dict, model_names, wnn):
    flows, params_all = [], []
    for name in model_names:
        mp = model_dict[name]
        h = jnp.tanh(x_flat @ mp["w1"] + mp["b1"])
        prm = jax.nn.sigmoid(h @ mp["w2"] + mp["b2"])
        fl = jnp.sum(prm * mp["coef"], axis=-1, keepdims=True) * x_flat[:, 0:1]
        flows.append(fl)
        params_all.append(prm)
    flows_cat = jnp.concatenate(flows, axis=1)
    hw = jnp.tanh(x_flat @ wnn["w1"] + wnn["b1"])
    logits = hw @ wnn["w2"] + wnn["b2"]
    w = jax.nn.softmax(logits, axis=-1)
    ens = jnp.sum(w * flows_cat, axis=-1, keepdims=True)
    return flows, params_all, w, ens


if __name__ == "__main__":
    # Small config consistent with ModelHandler.__init__
    # T*B = 130 deliberately NOT a multiple of the tile; tile_n=96 for the demo
    # -> 2 grid steps with a ragged (partial) last block, exercising the
    # pad-free cdiv path.
    T, B, F, H, P = 10, 13, 32, 64, 16
    config = {
        "out_path": "/tmp/unused",
        "device": "tpu",
        "mode": "train",
        "multimodel_type": "pnn_parallel",
        "train": {"target": ["streamflow"], "start_epoch": 0},
        "test": {"test_epoch": 0},
        "multimodel": {"use_rb_loss": False},
        "dpl_model": {
            "phy_model": {"model": ["HBV", "PRMS"], "n_params": P},
            "nn_model": {"input_size": F, "hidden_size": H},
        },
    }

    handler = ModelHandlerPallas(config, verbose=False)
    handler.tile_n = 96           # small tile for the tiny demo problem

    key = jax.random.PRNGKey(0)
    x_nn = jax.random.normal(key, (T, B, F), jnp.float32)
    dataset_dict = {"x_nn": x_nn}

    out = handler.forward(dataset_dict, eval=True)
    ens = handler.ensemble_output_dict["streamflow"]
    jax.block_until_ready(ens)

    # ---- verify against pure-JAX f32 reference ----
    # bf16 matmul operands + bf16 output slab => loosened tolerances.
    x_flat = x_nn.reshape(T * B, F)
    model_names = ["HBV", "PRMS"]
    ref_flows, ref_params, ref_w, ref_ens = _ref_forward(
        x_flat, handler.model_dict, model_names, handler.ensemble_generator)

    for i, name in enumerate(model_names):
        got_flow = out[name]["streamflow"].reshape(T * B, 1)
        got_params = out[name]["params"].reshape(T * B, P)
        assert jnp.allclose(got_flow, ref_flows[i], rtol=5e-2, atol=5e-2), \
            f"flow mismatch for {name}"
        assert jnp.allclose(got_params, ref_params[i], rtol=2e-2, atol=2e-2), \
            f"param mismatch for {name}"
        assert jnp.allclose(handler.weights[name].reshape(T * B),
                            ref_w[:, i], rtol=2e-2, atol=2e-2), \
            f"weight mismatch for {name}"

    assert jnp.allclose(ens.reshape(T * B, 1), ref_ens, rtol=5e-2, atol=5e-2), \
        "ensemble flow mismatch"

    print("KERNEL_OK")
</pallas_src>

<mosaic_0001>
module attributes {stable_mosaic.version = 11 : i64} {
  func.func @_fused_delta_ensemble_kernel(%arg0: i32, %arg1: memref<96x32xf32, #tpu.memory_space<vmem>>, %arg2: memref<32x192xbf16, #tpu.memory_space<vmem>>, %arg3: memref<1x192xf32, #tpu.memory_space<vmem>>, %arg4: memref<192x34xbf16, #tpu.memory_space<vmem>>, %arg5: memref<1x34xf32, #tpu.memory_space<vmem>>, %arg6: memref<1x32xf32, #tpu.memory_space<vmem>>, %arg7: memref<96x128xbf16, #tpu.memory_space<vmem>>) attributes {dimension_semantics = [#tpu.dimension_semantics<parallel>], iteration_bounds = array<i64: 2>, scalar_prefetch = 0 : i64, scratch_operands = 0 : i64, tpu.core_type = #tpu.core_type<tc>, window_params = [{transform_indices = @transform_0, window_bounds = array<i64: 96, 32>}, {pipeline_mode = #tpu.pipeline_mode<synchronous>, transform_indices = @transform_1, window_bounds = array<i64: 32, 192>}, {pipeline_mode = #tpu.pipeline_mode<synchronous>, transform_indices = @transform_2, window_bounds = array<i64: 1, 192>}, {pipeline_mode = #tpu.pipeline_mode<synchronous>, transform_indices = @transform_3, window_bounds = array<i64: 192, 34>}, {pipeline_mode = #tpu.pipeline_mode<synchronous>, transform_indices = @transform_4, window_bounds = array<i64: 1, 34>}, {pipeline_mode = #tpu.pipeline_mode<synchronous>, transform_indices = @transform_5, window_bounds = array<i64: 1, 32>}, {transform_indices = @transform_6, window_bounds = array<i64: 96, 128>}]} {
    %c0 = arith.constant 0 : index
    %c0_0 = arith.constant 0 : index
    %0 = vector.load %arg1[%c0, %c0_0] : memref<96x32xf32, #tpu.memory_space<vmem>>, vector<96x32xf32>
    %1 = arith.truncf %0 : vector<96x32xf32> to vector<96x32xbf16>
    %2 = vector.extract_strided_slice %0 {offsets = [0, 0], sizes = [96, 1], strides = [1, 1]} : vector<96x32xf32> to vector<96x1xf32>
    %c0_1 = arith.constant 0 : index
    %c0_2 = arith.constant 0 : index
    %3 = vector.load %arg2[%c0_1, %c0_2] : memref<32x192xbf16, #tpu.memory_space<vmem>>, vector<32x192xbf16>
    %cst = arith.constant dense<0.000000e+00> : vector<96x192xf32>
    %4 = tpu.matmul %1, %3, %cst {dimension_numbers = #tpu.dot_dimension_numbers<[1], [0], [0], [1], [0, 0, 1, 1], [], []>} : vector<96x32xbf16>, vector<32x192xbf16>, vector<96x192xf32> -> vector<96x192xf32>
    %c0_3 = arith.constant 0 : index
    %c0_4 = arith.constant 0 : index
    %5 = vector.load %arg3[%c0_3, %c0_4] : memref<1x192xf32, #tpu.memory_space<vmem>>, vector<1x192xf32>
    %6 = vector.broadcast %5 : vector<1x192xf32> to vector<96x192xf32>
    %7 = arith.addf %4, %6 : vector<96x192xf32>
    %8 = math.tanh %7 : vector<96x192xf32>
    %9 = arith.truncf %8 : vector<96x192xf32> to vector<96x192xbf16>
    %c0_5 = arith.constant 0 : index
    %c0_6 = arith.constant 0 : index
    %10 = vector.load %arg4[%c0_5, %c0_6] : memref<192x34xbf16, #tpu.memory_space<vmem>>, vector<192x34xbf16>
    %cst_7 = arith.constant dense<0.000000e+00> : vector<96x34xf32>
    %11 = tpu.matmul %9, %10, %cst_7 {dimension_numbers = #tpu.dot_dimension_numbers<[1], [0], [0], [1], [0, 0, 1, 1], [], []>} : vector<96x192xbf16>, vector<192x34xbf16>, vector<96x34xf32> -> vector<96x34xf32>
    %c0_8 = arith.constant 0 : index
    %c0_9 = arith.constant 0 : index
    %12 = vector.load %arg5[%c0_8, %c0_9] : memref<1x34xf32, #tpu.memory_space<vmem>>, vector<1x34xf32>
    %13 = vector.broadcast %12 : vector<1x34xf32> to vector<96x34xf32>
    %14 = arith.addf %11, %13 : vector<96x34xf32>
    %15 = vector.extract_strided_slice %14 {offsets = [0, 0], sizes = [96, 32], strides = [1, 1]} : vector<96x34xf32> to vector<96x32xf32>
    %16 = arith.negf %15 : vector<96x32xf32>
    %17 = math.exp %16 : vector<96x32xf32>
    %cst_10 = arith.constant 1.000000e+00 : f32
    %18 = vector.broadcast %cst_10 : f32 to vector<96x32xf32>
    %19 = arith.addf %18, %17 : vector<96x32xf32>
    %20 = arith.divf %18, %19 : vector<96x32xf32>
    %c0_11 = arith.constant 0 : index
    %c0_12 = arith.constant 0 : index
    %21 = vector.load %arg6[%c0_11, %c0_12] : memref<1x32xf32, #tpu.memory_space<vmem>>, vector<1x32xf32>
    %22 = vector.broadcast %21 : vector<1x32xf32> to vector<96x32xf32>
    %23 = arith.mulf %20, %22 : vector<96x32xf32>
    %24 = vector.extract_strided_slice %23 {offsets = [0, 0], sizes = [96, 16], strides = [1, 1]} : vector<96x32xf32> to vector<96x16xf32>
    %cst_13 = arith.constant dense<0.000000e+00> : vector<96xf32>
    %25 = vector.multi_reduction <add>, %24, %cst_13 [1] : vector<96x16xf32> to vector<96xf32>
    %26 = vector.shape_cast %25 : vector<96xf32> to vector<96x1xf32>
    %27 = vector.extract_strided_slice %23 {offsets = [0, 16], sizes = [96, 16], strides = [1, 1]} : vector<96x32xf32> to vector<96x16xf32>
    %cst_14 = arith.constant dense<0.000000e+00> : vector<96xf32>
    %28 = vector.multi_reduction <add>, %27, %cst_14 [1] : vector<96x16xf32> to vector<96xf32>
    %29 = vector.shape_cast %28 : vector<96xf32> to vector<96x1xf32>
    %30 = tpu.concatenate %26, %29 in 1 : vector<96x1xf32>, vector<96x1xf32> -> vector<96x2xf32>
    %31 = vector.broadcast %2 : vector<96x1xf32> to vector<96x2xf32>
    %32 = arith.mulf %30, %31 : vector<96x2xf32>
    %33 = vector.extract_strided_slice %14 {offsets = [0, 32], sizes = [96, 2], strides = [1, 1]} : vector<96x34xf32> to vector<96x2xf32>
    %cst_15 = arith.constant dense<0xFF800000> : vector<96xf32>
    %34 = vector.multi_reduction <maximumf>, %33, %cst_15 [1] : vector<96x2xf32> to vector<96xf32>
    %35 = vector.shape_cast %34 : vector<96xf32> to vector<96x1xf32>
    %36 = vector.broadcast %35 : vector<96x1xf32> to vector<96x2xf32>
    %37 = arith.subf %33, %36 : vector<96x2xf32>
    %38 = math.exp %37 : vector<96x2xf32>
    %cst_16 = arith.constant dense<0.000000e+00> : vector<96xf32>
    %39 = vector.multi_reduction <add>, %38, %cst_16 [1] : vector<96x2xf32> to vector<96xf32>
    %40 = vector.shape_cast %39 : vector<96xf32> to vector<96x1xf32>
    %41 = tpu.reciprocal %40 {approx = true} : vector<96x1xf32> -> vector<96x1xf32>
    %42 = vector.broadcast %41 : vector<96x1xf32> to vector<96x2xf32>
    %43 = arith.mulf %38, %42 : vector<96x2xf32>
    %44 = arith.mulf %43, %32 : vector<96x2xf32>
    %cst_17 = arith.constant dense<0.000000e+00> : vector<96xf32>
    %45 = vector.multi_reduction <add>, %44, %cst_17 [1] : vector<96x2xf32> to vector<96xf32>
    %46 = vector.shape_cast %45 : vector<96xf32> to vector<96x1xf32>
    %cst_18 = arith.constant 0.000000e+00 : f32
    %47 = vector.broadcast %cst_18 : f32 to vector<96x91xf32>
    %48 = tpu.concatenate %20, %32, %43, %46, %47 in 1 : vector<96x32xf32>, vector<96x2xf32>, vector<96x2xf32>, vector<96x1xf32>, vector<96x91xf32> -> vector<96x128xf32>
    %49 = arith.truncf %48 : vector<96x128xf32> to vector<96x128xbf16>
    %c0_19 = arith.constant 0 : index
    %c0_20 = arith.constant 0 : index
    %50 = vector.load %arg7[%c0_19, %c0_20] : memref<96x128xbf16, #tpu.memory_space<vmem>>, vector<96x128xbf16>
    tpu.vector_store %arg7[%c0_19, %c0_20], %49 {strides = array<i32>} : memref<96x128xbf16, #tpu.memory_space<vmem>>, vector<96x128xbf16>,
    return
  }
  func.func @transform_0(%arg0: i32) -> (i32, i32) {
    %c0_i32 = arith.constant 0 : i32
    %c0_i32_0 = arith.constant 0 : i32
    return %arg0, %c0_i32 : i32, i32
  }
  func.func @transform_1(%arg0: i32) -> (i32, i32) {
    %c0_i32 = arith.constant 0 : i32
    %c0_i32_0 = arith.constant 0 : i32
    %c0_i32_1 = arith.constant 0 : i32
    return %c0_i32, %c0_i32_0 : i32, i32
  }
  func.func @transform_2(%arg0: i32) -> (i32, i32) {
    %c0_i32 = arith.constant 0 : i32
    %c0_i32_0 = arith.constant 0 : i32
    %c0_i32_1 = arith.constant 0 : i32
    return %c0_i32, %c0_i32_0 : i32, i32
  }
  func.func @transform_3(%arg0: i32) -> (i32, i32) {
    %c0_i32 = arith.constant 0 : i32
    %c0_i32_0 = arith.constant 0 : i32
    %c0_i32_1 = arith.constant 0 : i32
    return %c0_i32, %c0_i32_0 : i32, i32
  }
  func.func @transform_4(%arg0: i32) -> (i32, i32) {
    %c0_i32 = arith.constant 0 : i32
    %c0_i32_0 = arith.constant 0 : i32
    %c0_i32_1 = arith.constant 0 : i32
    return %c0_i32, %c0_i32_0 : i32, i32
  }
  func.func @transform_5(%arg0: i32) -> (i32, i32) {
    %c0_i32 = arith.constant 0 : i32
    %c0_i32_0 = arith.constant 0 : i32
    %c0_i32_1 = arith.constant 0 : i32
    return %c0_i32, %c0_i32_0 : i32, i32
  }
  func.func @transform_6(%arg0: i32) -> (i32, i32) {
    %c0_i32 = arith.constant 0 : i32
    %c0_i32_0 = arith.constant 0 : i32
    return %arg0, %c0_i32 : i32, i32
  }
}

</mosaic_0001>

<llo_original>
// kernel: tpu_custom_call.1
$region0: #{tpu_custom_call.1}
  #allocation0 [shape = 'u32[]', space=smem, size = 0x4, offset = 0x4, fixed_abs, tag = 'smem constant byte address 0x4 - core index']
  #allocation1 [shape = 'u32[144,128]{1,0:T(1,128)}', space=vmem, size = 0x12000, scoped, tag = 'internal scratch']
  %s0 = inlined_call_operand.vmem [shape: f32[130,32], index: 0, kind: input, shape index: {}]
  %s1 = inlined_call_operand.vmem [shape: bf16[32,192], index: 1, kind: input, shape index: {}]
  %s2 = inlined_call_operand.vmem [shape: f32[1,192], index: 2, kind: input, shape index: {}]
  %s3 = inlined_call_operand.vmem [shape: bf16[192,34], index: 3, kind: input, shape index: {}]
  %s4 = inlined_call_operand.vmem [shape: f32[1,34], index: 4, kind: input, shape index: {}]
  %s5 = inlined_call_operand.vmem [shape: f32[1,32], index: 5, kind: input, shape index: {}]
  %s6 = inlined_call_operand.hbm [shape: bf16[130,128], index: 6, kind: output, shape index: {}]
  %s7 = sld [smem:[#allocation0]]
  $region57: #{tpu_custom_call.1} parent=0
    _
  %s9 = ssub.s32 1, %s7
  %s10 = scalar_select 0, %s9, %s7
  $region1: #{tpu_custom_call.1} parent=0
    #allocation2 [shape = 'u8[49152]{0}', space=vmem, size = 0xc000, scoped, tag = 'output window, operand 0']
    #allocation3 [shape = 's32[2]{0}', space=sflag, size = 0x8, scoped, tag = 'scoped memory for tpu_custom_call.1']
    %11 = vsyncpa [#allocation3], 0
    %s12 = scalar_lea.sflag [#allocation3], 1
    %13 = vsyncpa %s12, 0
    loop: start=0, step=1, limit=4
    $region2: #{tpu_custom_call.1} parent=1 // loop_pre_header
      _
    $region3: #{tpu_custom_call.1} parent=1 // loop_header
      %s15 = sphi 0, %s19
      %p16 = scmp.ge.s32.totalorder %s15, 4
      %s25 = sphi 0, %s27
      %s28 = sphi 0, %s25
      %s29 = sphi 0, %s28
      %s45 = sphi 0, %s29
      %s49 = sphi 0, %s49
      %s51 = sphi 0, %s49
      %s52 = sphi 0, %s51
      %s66 = sphi 0, %s52
      %s70 = sphi 0, %s70
      %s72 = sphi 0, %s70
      %s73 = sphi 0, %s72
      %s87 = sphi 0, %s73
      %s91 = sphi 0, %s91
      %s93 = sphi 0, %s91
      %s94 = sphi 0, %s93
      %s108 = sphi 0, %s94
      %s112 = sphi 0, %s112
      %s114 = sphi 0, %s112
      %s115 = sphi 0, %s114
      %s129 = sphi 0, %s115
      %s133 = sphi 0, %s133
      %s135 = sphi 0, %s133
      %s136 = sphi 0, %s135
      %s150 = sphi 0, %s136
      %s156 = sphi 0, %s158
      %s159 = sphi 0, %s156
      %s160 = sphi 0, %s159
      %s176 = sphi 0, %s160
    $region4: #{tpu_custom_call.1} parent=1 // loop_header_branch
      %18 = sbr.rel (%p16) target = $region8
    $region5: #{tpu_custom_call.1} parent=1 // loop_body
      %s20 = ssub.s32 %s15, 1
      %s21 = ssub.s32 %s15, 2
      %s22 = sadd.s32 %s15, 1
      %s23 = ssub.s32 %s15, %s22
      %p24 = scmp.eq.s32.totalorder %s23, 0
      %s26 = sadd.s32 %s25, 1
      %s27 = scalar_select %p24, %s25, %s26
      %p30 = pneg %p24
      %p31 = scmp.eq.s32.totalorder %s15, 1
      %p32 = por %p30, %p31
      %p33 = scmp.ne.s32.totalorder %s25, %s28
      %p34 = scmp.eq.s32.totalorder %s15, 0
      %p35 = por %p33, %p34
      %p36 = scmp.ne.s32.totalorder %s25, %s28
      %p37 = scmp.eq.s32.totalorder %s20, 1
      %p38 = por %p36, %p37
      %p39 = scmp.ne.s32.totalorder %s28, %s29
      %p40 = scmp.eq.s32.totalorder %s20, 0
      %p41 = por %p39, %p40
      %p42 = scmp.ne.s32.totalorder %s28, %s29
      %p43 = scmp.eq.s32.totalorder %s21, 1
      %p44 = por %p42, %p43
      %p46 = scmp.ne.s32.totalorder %s29, %s45
      %p47 = scmp.eq.s32.totalorder %s21, 0
      %p48 = por %p46, %p47
      %s50 = sadd.s32 %s49, 1
      %p53 = scmp.eq.s32.totalorder %s15, 1
      %p54 = scmp.ne.s32.totalorder %s49, %s51
      %p55 = scmp.eq.s32.totalorder %s15, 0
      %p56 = por %p54, %p55
      %p57 = scmp.ne.s32.totalorder %s49, %s51
      %p58 = scmp.eq.s32.totalorder %s20, 1
      %p59 = por %p57, %p58
      %p60 = scmp.ne.s32.totalorder %s51, %s52
      %p61 = scmp.eq.s32.totalorder %s20, 0
      %p62 = por %p60, %p61
      %p63 = scmp.ne.s32.totalorder %s51, %s52
      %p64 = scmp.eq.s32.totalorder %s21, 1
      %p65 = por %p63, %p64
      %p67 = scmp.ne.s32.totalorder %s52, %s66
      %p68 = scmp.eq.s32.totalorder %s21, 0
      %p69 = por %p67, %p68
      %s71 = sadd.s32 %s70, 1
      %p74 = scmp.eq.s32.totalorder %s15, 1
      %p75 = scmp.ne.s32.totalorder %s70, %s72
      %p76 = scmp.eq.s32.totalorder %s15, 0
      %p77 = por %p75, %p76
      %p78 = scmp.ne.s32.totalorder %s70, %s72
      %p79 = scmp.eq.s32.totalorder %s20, 1
      %p80 = por %p78, %p79
      %p81 = scmp.ne.s32.totalorder %s72, %s73
      %p82 = scmp.eq.s32.totalorder %s20, 0
      %p83 = por %p81, %p82
      %p84 = scmp.ne.s32.totalorder %s72, %s73
      %p85 = scmp.eq.s32.totalorder %s21, 1
      %p86 = por %p84, %p85
      %p88 = scmp.ne.s32.totalorder %s73, %s87
      %p89 = scmp.eq.s32.totalorder %s21, 0
      %p90 = por %p88, %p89
      %s92 = sadd.s32 %s91, 1
      %p95 = scmp.eq.s32.totalorder %s15, 1
      %p96 = scmp.ne.s32.totalorder %s91, %s93
      %p97 = scmp.eq.s32.totalorder %s15, 0
      %p98 = por %p96, %p97
      %p99 = scmp.ne.s32.totalorder %s91, %s93
      %p100 = scmp.eq.s32.totalorder %s20, 1
      %p101 = por %p99, %p100
      %p102 = scmp.ne.s32.totalorder %s93, %s94
      %p103 = scmp.eq.s32.totalorder %s20, 0
      %p104 = por %p102, %p103
      %p105 = scmp.ne.s32.totalorder %s93, %s94
      %p106 = scmp.eq.s32.totalorder %s21, 1
      %p107 = por %p105, %p106
      %p109 = scmp.ne.s32.totalorder %s94, %s108
      %p110 = scmp.eq.s32.totalorder %s21, 0
      %p111 = por %p109, %p110
      %s113 = sadd.s32 %s112, 1
      %p116 = scmp.eq.s32.totalorder %s15, 1
      %p117 = scmp.ne.s32.totalorder %s112, %s114
      %p118 = scmp.eq.s32.totalorder %s15, 0
      %p119 = por %p117, %p118
      %p120 = scmp.ne.s32.totalorder %s112, %s114
      %p121 = scmp.eq.s32.totalorder %s20, 1
      %p122 = por %p120, %p121
      %p123 = scmp.ne.s32.totalorder %s114, %s115
      %p124 = scmp.eq.s32.totalorder %s20, 0
      %p125 = por %p123, %p124
      %p126 = scmp.ne.s32.totalorder %s114, %s115
      %p127 = scmp.eq.s32.totalorder %s21, 1
      %p128 = por %p126, %p127
      %p130 = scmp.ne.s32.totalorder %s115, %s129
      %p131 = scmp.eq.s32.totalorder %s21, 0
      %p132 = por %p130, %p131
      %s134 = sadd.s32 %s133, 1
      %p137 = scmp.eq.s32.totalorder %s15, 1
      %p138 = scmp.ne.s32.totalorder %s133, %s135
      %p139 = scmp.eq.s32.totalorder %s15, 0
      %p140 = por %p138, %p139
      %p141 = scmp.ne.s32.totalorder %s133, %s135
      %p142 = scmp.eq.s32.totalorder %s20, 1
      %p143 = por %p141, %p142
      %p144 = scmp.ne.s32.totalorder %s135, %s136
      %p145 = scmp.eq.s32.totalorder %s20, 0
      %p146 = por %p144, %p145
      %p147 = scmp.ne.s32.totalorder %s135, %s136
      %p148 = scmp.eq.s32.totalorder %s21, 1
      %p149 = por %p147, %p148
      %p151 = scmp.ne.s32.totalorder %s136, %s150
      %p152 = scmp.eq.s32.totalorder %s21, 0
      %p153 = por %p151, %p152
      %s154 = ssub.s32 %s15, %s22
      %p155 = scmp.eq.s32.totalorder %s154, 0
      %s157 = sadd.s32 %s156, 1
      %s158 = scalar_select %p155, %s156, %s157
      %p161 = pneg %p155
      %p162 = scmp.eq.s32.totalorder %s15, 1
      %p163 = por %p161, %p162
      %p164 = scmp.ne.s32.totalorder %s156, %s159
      %p165 = scmp.eq.s32.totalorder %s15, 0
      %p166 = por %p164, %p165
      %p167 = scmp.ne.s32.totalorder %s156, %s159
      %p168 = scmp.eq.s32.totalorder %s20, 1
      %p169 = por %p167, %p168
      %p170 = scmp.ne.s32.totalorder %s159, %s160
      %p171 = scmp.eq.s32.totalorder %s20, 0
      %p172 = por %p170, %p171
      %p173 = scmp.ne.s32.totalorder %s159, %s160
      %p174 = scmp.eq.s32.totalorder %s21, 1
      %p175 = por %p173, %p174
      %p177 = scmp.ne.s32.totalorder %s160, %s176
      %p178 = scmp.eq.s32.totalorder %s21, 0
      %p179 = por %p177, %p178
      %p180 = scmp.le.s32.totalorder 1, %s15
      %p181 = scmp.lt.s32.totalorder %s15, 3
      %p182 = pnand %p180, %p181
      %p183 = pneg %p182
      // Predicated region
      $region9: #{tpu_custom_call.1} parent=5 // pred_check
        _
      $region10: #{tpu_custom_call.1} parent=5 // pred_check_branch
        %185 = sbr.rel (%p182) target = $region12
      $region11: #{tpu_custom_call.1} parent=5 // pred_region
        %s186 = ssub.s32 %s15, 1
        // Predicated region
        $region13: #{tpu_custom_call.1} parent=11 // pred_check
          %p187 = pneg %p62
        $region14: #{tpu_custom_call.1} parent=11 // pred_check_branch
          %189 = sbr.rel (%p187) target = $region16
        $region15: #{tpu_custom_call.1} parent=11 // pred_region
          _
        $region16: #{tpu_custom_call.1} parent=11 // pred_fallthru
          _
        // Predicated region
        $region17: #{tpu_custom_call.1} parent=11 // pred_check
          %p190 = pneg %p83
        $region18: #{tpu_custom_call.1} parent=11 // pred_check_branch
          %192 = sbr.rel (%p190) target = $region20
        $region19: #{tpu_custom_call.1} parent=11 // pred_region
          _
        $region20: #{tpu_custom_call.1} parent=11 // pred_fallthru
          _
        // Predicated region
        $region21: #{tpu_custom_call.1} parent=11 // pred_check
          %p193 = pneg %p104
        $region22: #{tpu_custom_call.1} parent=11 // pred_check_branch
          %195 = sbr.rel (%p193) target = $region24
        $region23: #{tpu_custom_call.1} parent=11 // pred_region
          _
        $region24: #{tpu_custom_call.1} parent=11 // pred_fallthru
          _
        // Predicated region
        $region25: #{tpu_custom_call.1} parent=11 // pred_check
          %p196 = pneg %p125
        $region26: #{tpu_custom_call.1} parent=11 // pred_check_branch
          %198 = sbr.rel (%p196) target = $region28
        $region27: #{tpu_custom_call.1} parent=11 // pred_region
          _
        $region28: #{tpu_custom_call.1} parent=11 // pred_fallthru
          _
        // Predicated region
        $region29: #{tpu_custom_call.1} parent=11 // pred_check
          %p199 = pneg %p146
        $region30: #{tpu_custom_call.1} parent=11 // pred_check_branch
          %201 = sbr.rel (%p199) target = $region32
        $region31: #{tpu_custom_call.1} parent=11 // pred_region
          _
        $region32: #{tpu_custom_call.1} parent=11 // pred_fallthru
          _
      $region12: #{tpu_custom_call.1} parent=5 // pred_fallthru
        _
      %p202 = scmp.lt.s32.totalorder %s15, 2
      // Predicated region
      $region33: #{tpu_custom_call.1} parent=5 // pred_check
        %p203 = pneg %p202
      $region34: #{tpu_custom_call.1} parent=5 // pred_check_branch
        %205 = sbr.rel (%p203) target = $region36
      $region35: #{tpu_custom_call.1} parent=5 // pred_region
        // Predicated region
        $region37: #{tpu_custom_call.1} parent=35 // pred_check
          %p206 = pneg %p35
        $region38: #{tpu_custom_call.1} parent=35 // pred_check_branch
          %208 = sbr.rel (%p206) target = $region40
        $region39: #{tpu_custom_call.1} parent=35 // pred_region
          %s209 = smul.u32 12, %s15
          %s210 = ssub.s32 17, %s209
          %p211 = scmp.lt.s32.totalorder %s210, 12
          %s212 = scalar_select %p211, %s210, 12
          %s213 = smul.u32 128, %s212
          %p214 = scmp.lt.s32.totalorder %s209, 16
          %s215 = scalar_select %p214, %s209, 16
          %s216 = smul.addr %s215, 8
          %s217 = scalar_lea.vmem %s0, %s216
          %s218 = smul.u32 12, %s15
          %s219 = ssub.s32 17, %s218
          %p220 = scmp.lt.s32.totalorder %s219, 12
          %s221 = scalar_select %p220, %s219, 12
          %s222 = smul.u32 128, %s221
        $region40: #{tpu_custom_call.1} parent=35 // pred_fallthru
          _
      $region36: #{tpu_custom_call.1} parent=5 // pred_fallthru
        _
      %p223 = scmp.le.s32.totalorder 1, %s15
      %p224 = scmp.lt.s32.totalorder %s15, 3
      %p225 = pnand %p223, %p224
      %p226 = pneg %p225
      // Predicated region
      $region41: #{tpu_custom_call.1} parent=5 // pred_check
        _
      $region42: #{tpu_custom_call.1} parent=5 // pred_check_branch
        %228 = sbr.rel (%p225) target = $region44
      $region43: #{tpu_custom_call.1} parent=5 // pred_region
        %s229 = ssub.s32 %s15, 1
        %s230 = smul.u32 12, %s20
        %s231 = ssub.s32 17, %s230
        %p232 = scmp.lt.s32.totalorder %s231, 12
        %s233 = scalar_select %p232, %s231, 12
        %s234 = smul.u32 128, %s233
        %p235 = scmp.lt.s32.totalorder %s230, 16
        %s236 = scalar_select %p235, %s230, 16
        %s237 = smul.addr %s236, 8
        %s238 = scalar_lea.vmem %s0, %s237
        %p239 = pneg %p41
        %p240 = pneg %p38
        %p241 = pneg %p62
        %p242 = pneg %p59
        %p243 = pneg %p83
        %p244 = pneg %p80
        %p245 = pneg %p104
        %p246 = pneg %p101
        %p247 = pneg %p125
        %p248 = pneg %p122
        %p249 = pneg %p146
        %p250 = pneg %p143
        %p251 = pneg %p172
        %p252 = pneg %p169
        %s253 = sand.u32 %s159, 1
        %s254 = scalar_lea.sflag [#allocation3], %s253
        %s255 = sand.u32 %s159, 1
        %s256 = smul.addr %s255, 48
        %s257 = scalar_lea.vmem [#allocation2], %s256
        %s258 = smul.u32 12, %s20
        %s259 = ssub.s32 17, %s258
        %p260 = scmp.lt.s32.totalorder %s259, 12
        %s261 = scalar_select %p260, %s259, 12
        %s262 = smul.u32 128, %s261
        %p263 = scmp.lt.s32.totalorder %s258, 16
        %s264 = scalar_select %p263, %s258, 16
        %s265 = smul.addr %s264, 8
        %s266 = scalar_lea.vmem %s0, %s265
        %s267 = smul.u32 12, %s20
        %s268 = ssub.s32 17, %s267
        %p269 = scmp.lt.s32.totalorder %s268, 12
        %s270 = scalar_select %p269, %s268, 12
        %s271 = smul.u32 128, %s270
        %s272 = smul.u32 12, %s20
        %s273 = ssub.s32 17, %s272
        %p274 = scmp.lt.s32.totalorder %s273, 12
        %s275 = scalar_select %p274, %s273, 12
        %s276 = smul.u32 64, %s275
        %v278 = vld [vmem:[%s266] sm:$0xff]
        %v279 = vld [vmem:[%s266 + $0x8] sm:$0xff]
        %v280 = vld [vmem:[%s266 + $0x10] sm:$0xff]
        %v281 = vld [vmem:[%s266 + $0x18] sm:$0xff]
        %v282 = vld [vmem:[%s266 + $0x20] sm:$0xff]
        %v283 = vld [vmem:[%s266 + $0x28] sm:$0xff]
        %v284 = vld [vmem:[%s266 + $0x30] sm:$0xff]
        %v285 = vld [vmem:[%s266 + $0x38] sm:$0xff]
        %v286 = vld [vmem:[%s266 + $0x40] sm:$0xff]
        %v287 = vld [vmem:[%s266 + $0x48] sm:$0xff]
        %v288 = vld [vmem:[%s266 + $0x50] sm:$0xff]
        %v289 = vld [vmem:[%s266 + $0x58] sm:$0xff]
        %v290 = vpack.c.bf16 %v279, %v278
        %v291 = vpack.c.bf16 %v281, %v280
        %v292 = vpack.c.bf16 %v283, %v282
        %v293 = vpack.c.bf16 %v285, %v284
        %v294 = vpack.c.bf16 %v287, %v286
        %v295 = vpack.c.bf16 %v289, %v288
        %v296 = vld [vmem:[%s1] sm:$0xff]
        %v297 = vld [vmem:[%s1 + $0x8] sm:$0xff]
        %v298 = vld [vmem:[%s1 + $0x10] sm:$0xff]
        %v299 = vld [vmem:[%s1 + $0x18] sm:$0xff]
        %v300 = vld [vmem:[%s2] sm:$0x3]
        %v302 = vlaneseq
        %v303 = vshrl.u32 %v302, 7
        %v304 = vsub.s32 0, %v303
        %v305 = vrot.slane %v300, %v304
        %v306 = vlaneseq
        %v307 = vshrl.u32 %v306, 7
        %v308 = vsub.s32 1, %v307
        %v309 = vrot.slane %v300, %v308
        %v316 = vunpack.c.l.b16 %v296
        %v317 = vunpack.c.h.b16 %v296
        %v318 = vunpack.c.l.b16 %v297
        %v319 = vunpack.c.h.b16 %v297
        %v320 = vunpack.c.l.b16 %v298
        %v321 = vunpack.c.h.b16 %v298
        %v322 = vunpack.c.l.b16 %v299
        %v323 = vunpack.c.h.b16 %v299
        %v324 = vpack.c.b16 %v318, %v316
        %v325 = vpack.c.b16 %v319, %v317
        %v326 = vpack.c.b16 %v322, %v320
        %v327 = vpack.c.b16 %v323, %v321
        %vm332 = vcmask 261120
        %v334 = vsel %vm332, %v290, 0
        %v337 = vsel %vm332, %v291, 0
        %v340 = vsel %vm332, %v292, 0
        %v343 = vsel %vm332, %v293, 0
        %v346 = vsel %vm332, %v294, 0
        %v349 = vsel %vm332, %v295, 0
        %351 = vmatprep.subr.bf16.mxu0 0
        %352 = vmatpush1.bf16.msra.mxu0 0
        %353 = vmatprep.subr.bf16.mxu0 0
        %354 = vmatpush1.bf16.msra.mxu0 0
        %355 = vmatprep.subr.bf16.mxu0 0
        %356 = vmatpush1.bf16.msra.mxu0 0
        %357 = vmatprep.subr.bf16.mxu0 0
        %358 = vmatpush1.bf16.msra.mxu0 0
        %359 = vmatprep.subr.bf16.mxu0 0
        %360 = vmatpush1.bf16.msra.mxu0 0
        %361 = vmatprep.subr.bf16.mxu0 0
        %362 = vmatpush1.bf16.msra.mxu0 0
        %363 = vmatprep.subr.bf16.mxu0 %v327
        %364 = vmatpush1.bf16.msra.mxu0 %v326
        %365 = vmatprep.subr.bf16.mxu0 %v325
        %366 = vmatpush1.bf16.msra.mxu0 %v324
        %367 = vmatprep.subr.bf16.mxu0 0
        %368 = vmatpush2.bf16.msra.mxu0 0
        %369 = vmatprep.subr.bf16.mxu0 0
        %370 = vmatpush2.bf16.msra.mxu0 0
        %371 = vmatprep.subr.bf16.mxu0 0
        %372 = vmatpush2.bf16.msra.mxu0 0
        %373 = vmatprep.subr.bf16.mxu0 0
        %374 = vmatpush2.bf16.msra.mxu0 0
        %375 = vmatprep.subr.bf16.mxu0 0
        %376 = vmatpush2.bf16.msra.mxu0 0
        %377 = vmatprep.subr.bf16.mxu0 0
        %378 = vmatpush2.bf16.msra.mxu0 0
        %379 = vmatprep.subr.bf16.mxu0 0
        %380 = vmatpush2.bf16.msra.mxu0 0
        %381 = vmatprep.subr.bf16.mxu0 0
        %382 = vmatpush2.bf16.msra.mxu0 0
        %383 = vmatprep.mubr.bf16.mxu0 0
        %384 = vmatmul.mubr.bf16.gmra.mxu0 %v334
        %v385 = vpop.f32.mrf.mxu0
        %v386 = vadd.f32 %v305, %v385
        %v387 = vpop.f32.mrf.mxu0
        %v388 = vadd.f32 %v309, %v387
        %v389 = vpop.f32.mrf.mxu0
        %v390 = vadd.f32 %v305, %v389
        %v391 = vpop.f32.mrf.mxu0
        %v392 = vadd.f32 %v309, %v391
        %393 = vmatprep.mubr.bf16.mxu0 0
        %394 = vmatmul.mubr.bf16.gmra.mxu0 %v337
        %v395 = vpop.f32.mrf.mxu0
        %v396 = vadd.f32 %v305, %v395
        %v397 = vpop.f32.mrf.mxu0
        %v398 = vadd.f32 %v309, %v397
        %v399 = vpop.f32.mrf.mxu0
        %v400 = vadd.f32 %v305, %v399
        %v401 = vpop.f32.mrf.mxu0
        %v402 = vadd.f32 %v309, %v401
        %403 = vmatprep.mubr.bf16.mxu0 0
        %404 = vmatmul.mubr.bf16.gmra.mxu0 %v340
        %v405 = vpop.f32.mrf.mxu0
        %v406 = vadd.f32 %v305, %v405
        %v407 = vpop.f32.mrf.mxu0
        %v408 = vadd.f32 %v309, %v407
        %v409 = vpop.f32.mrf.mxu0
        %v410 = vadd.f32 %v305, %v409
        %v411 = vpop.f32.mrf.mxu0
        %v412 = vadd.f32 %v309, %v411
        %413 = vmatprep.mubr.bf16.mxu0 0
        %414 = vmatmul.mubr.bf16.gmra.mxu0 %v343
        %v415 = vpop.f32.mrf.mxu0
        %v416 = vadd.f32 %v305, %v415
        %v417 = vpop.f32.mrf.mxu0
        %v418 = vadd.f32 %v309, %v417
        %v419 = vpop.f32.mrf.mxu0
        %v420 = vadd.f32 %v305, %v419
        %v421 = vpop.f32.mrf.mxu0
        %v422 = vadd.f32 %v309, %v421
        %423 = vmatprep.mubr.bf16.mxu0 0
        %424 = vmatmul.mubr.bf16.gmra.mxu0 %v346
        %v425 = vpop.f32.mrf.mxu0
        %v426 = vadd.f32 %v305, %v425
        %v427 = vpop.f32.mrf.mxu0
        %v428 = vadd.f32 %v309, %v427
        %v429 = vpop.f32.mrf.mxu0
        %v430 = vadd.f32 %v305, %v429
        %v431 = vpop.f32.mrf.mxu0
        %v432 = vadd.f32 %v309, %v431
        %433 = vmatprep.mubr.bf16.mxu0 0
        %434 = vmatmul.mubr.bf16.gmra.mxu0 %v349
        %v435 = vpop.f32.mrf.mxu0
        %v436 = vadd.f32 %v305, %v435
        %v437 = vpop.f32.mrf.mxu0
        %v438 = vadd.f32 %v309, %v437
        %v439 = vpop.f32.mrf.mxu0
        %v440 = vadd.f32 %v305, %v439
        %v441 = vpop.f32.mrf.mxu0
        %v442 = vadd.f32 %v309, %v441
        %443 = vdwg.mxu0
        %v444 = vtanh.pop %v386
        %v445 = vtanh.pop %v388
        %v446 = vtanh.pop %v390
        %v447 = vtanh.pop %v392
        %v448 = vtanh.pop %v396
        %v449 = vtanh.pop %v398
        %v450 = vtanh.pop %v400
        %v451 = vtanh.pop %v402
        %v452 = vtanh.pop %v406
        %v453 = vtanh.pop %v408
        %v454 = vtanh.pop %v410
        %v455 = vtanh.pop %v412
        %v456 = vtanh.pop %v416
        %v457 = vtanh.pop %v418
        %v458 = vtanh.pop %v420
        %v459 = vtanh.pop %v422
        %v460 = vtanh.pop %v426
        %v461 = vtanh.pop %v428
        %v462 = vtanh.pop %v430
        %v463 = vtanh.pop %v432
        %v464 = vtanh.pop %v436
        %v465 = vtanh.pop %v438
        %v466 = vtanh.pop %v440
        %v467 = vtanh.pop %v442
        %v468 = vpack.c.bf16 %v446, %v444
        %v469 = vpack.c.bf16 %v447, %v445
        %v470 = vpack.c.bf16 %v450, %v448
        %v471 = vpack.c.bf16 %v451, %v449
        %v472 = vpack.c.bf16 %v454, %v452
        %v473 = vpack.c.bf16 %v455, %v453
        %v474 = vpack.c.bf16 %v458, %v456
        %v475 = vpack.c.bf16 %v459, %v457
        %v476 = vpack.c.bf16 %v462, %v460
        %v477 = vpack.c.bf16 %v463, %v461
        %v478 = vpack.c.bf16 %v466, %v464
        %v479 = vpack.c.bf16 %v467, %v465
        %v480 = vld [vmem:[%s3] sm:$0xf]
        %v481 = vld [vmem:[%s3 + $0x4] sm:$0xf]
        %v482 = vld [vmem:[%s3 + $0x8] sm:$0xf]
        %v483 = vld [vmem:[%s3 + $0xc] sm:$0xf]
        %v484 = vld [vmem:[%s3 + $0x10] sm:$0xf]
        %v485 = vld [vmem:[%s3 + $0x14] sm:$0xf]
        %v486 = vld [vmem:[%s3 + $0x18] sm:$0xf]
        %v487 = vld [vmem:[%s3 + $0x1c] sm:$0xf]
        %v488 = vld [vmem:[%s3 + $0x20] sm:$0xf]
        %v489 = vld [vmem:[%s3 + $0x24] sm:$0xf]
        %v490 = vld [vmem:[%s3 + $0x28] sm:$0xf]
        %v491 = vld [vmem:[%s3 + $0x2c] sm:$0xf]
        %v492 = vld [vmem:[%s3 + $0x30] sm:$0xf]
        %v493 = vld [vmem:[%s3 + $0x34] sm:$0xf]
        %v494 = vld [vmem:[%s3 + $0x38] sm:$0xf]
        %v495 = vld [vmem:[%s3 + $0x3c] sm:$0xf]
        %v496 = vld [vmem:[%s3 + $0x40] sm:$0xf]
        %v497 = vld [vmem:[%s3 + $0x44] sm:$0xf]
        %v498 = vld [vmem:[%s3 + $0x48] sm:$0xf]
        %v499 = vld [vmem:[%s3 + $0x4c] sm:$0xf]
        %v500 = vld [vmem:[%s3 + $0x50] sm:$0xf]
        %v501 = vld [vmem:[%s3 + $0x54] sm:$0xf]
        %v502 = vld [vmem:[%s3 + $0x58] sm:$0xf]
        %v503 = vld [vmem:[%s3 + $0x5c] sm:$0xf]
        %v504 = vld [vmem:[%s4] sm:$0x1]
        %v506 = vlaneseq
        %v507 = vshrl.u32 %v506, 7
        %v508 = vsub.s32 0, %v507
        %v509 = vrot.slane %v504, %v508
        %v535 = vunpack.c.l.b16 %v480
        %v536 = vunpack.c.l.b16 %v481
        %v537 = vunpack.c.l.b16 %v482
        %v538 = vunpack.c.l.b16 %v483
        %v539 = vunpack.c.l.b16 %v484
        %v540 = vunpack.c.l.b16 %v485
        %v541 = vunpack.c.l.b16 %v486
        %v542 = vunpack.c.l.b16 %v487
        %v543 = vunpack.c.l.b16 %v488
        %v544 = vunpack.c.l.b16 %v489
        %v545 = vunpack.c.l.b16 %v490
        %v546 = vunpack.c.l.b16 %v491
        %v547 = vunpack.c.l.b16 %v492
        %v548 = vunpack.c.l.b16 %v493
        %v549 = vunpack.c.l.b16 %v494
        %v550 = vunpack.c.l.b16 %v495
        %v551 = vunpack.c.l.b16 %v496
        %v552 = vunpack.c.l.b16 %v497
        %v553 = vunpack.c.l.b16 %v498
        %v554 = vunpack.c.l.b16 %v499
        %v555 = vunpack.c.l.b16 %v500
        %v556 = vunpack.c.l.b16 %v501
        %v557 = vunpack.c.l.b16 %v502
        %v558 = vunpack.c.l.b16 %v503
        %v559 = vpack.c.b16 %v536, %v535
        %v560 = vpack.c.b16 %v538, %v537
        %v561 = vpack.c.b16 %v540, %v539
        %v562 = vpack.c.b16 %v542, %v541
        %v563 = vpack.c.b16 %v544, %v543
        %v564 = vpack.c.b16 %v546, %v545
        %v565 = vpack.c.b16 %v548, %v547
        %v566 = vpack.c.b16 %v550, %v549
        %v567 = vpack.c.b16 %v552, %v551
        %v568 = vpack.c.b16 %v554, %v553
        %v569 = vpack.c.b16 %v556, %v555
        %v570 = vpack.c.b16 %v558, %v557
        %vm583 = vcmask 523264
        %v585 = vsel %vm583, %v469, 0
        %v588 = vsel %vm583, %v471, 0
        %v591 = vsel %vm583, %v473, 0
        %v594 = vsel %vm583, %v475, 0
        %v597 = vsel %vm583, %v477, 0
        %v600 = vsel %vm583, %v479, 0
        %602 = vmatprep.subr.bf16.mxu0 0
        %603 = vmatpush1.bf16.msra.mxu0 %v566
        %604 = vmatprep.subr.bf16.mxu0 0
        %605 = vmatpush1.bf16.msra.mxu0 %v565
        %606 = vmatprep.subr.bf16.mxu0 0
        %607 = vmatpush1.bf16.msra.mxu0 %v564
        %608 = vmatprep.subr.bf16.mxu0 0
        %609 = vmatpush1.bf16.msra.mxu0 %v563
        %610 = vmatprep.subr.bf16.mxu0 0
        %611 = vmatpush1.bf16.msra.mxu0 %v562
        %612 = vmatprep.subr.bf16.mxu0 0
        %613 = vmatpush1.bf16.msra.mxu0 %v561
        %614 = vmatprep.subr.bf16.mxu0 0
        %615 = vmatpush1.bf16.msra.mxu0 %v560
        %616 = vmatprep.subr.bf16.mxu0 0
        %617 = vmatpush1.bf16.msra.mxu0 %v559
        %618 = vmatprep.subr.bf16.mxu0 0
        %619 = vmatpush2.bf16.msra.mxu0 0
        %620 = vmatprep.subr.bf16.mxu0 0
        %621 = vmatpush2.bf16.msra.mxu0 0
        %622 = vmatprep.subr.bf16.mxu0 0
        %623 = vmatpush2.bf16.msra.mxu0 0
        %624 = vmatprep.subr.bf16.mxu0 0
        %625 = vmatpush2.bf16.msra.mxu0 0
        %626 = vmatprep.subr.bf16.mxu0 0
        %627 = vmatpush2.bf16.msra.mxu0 %v570
        %628 = vmatprep.subr.bf16.mxu0 0
        %629 = vmatpush2.bf16.msra.mxu0 %v569
        %630 = vmatprep.subr.bf16.mxu0 0
        %631 = vmatpush2.bf16.msra.mxu0 %v568
        %632 = vmatprep.subr.bf16.mxu0 0
        %633 = vmatpush2.bf16.msra.mxu0 %v567
        %634 = vmatprep.mubr.bf16.mxu0 %v585
        %635 = vmatmul.mubr.bf16.gmra.mxu0 %v468
        %v636 = vpop.f32.mrf.mxu0
        %v637 = vadd.f32 %v509, %v636
        %v638 = vpop.f32.mrf.mxu0
        %v639 = vpop.f32.mrf.mxu0
        %v640 = vadd.f32 %v509, %v639
        %v641 = vpop.f32.mrf.mxu0
        %642 = vmatprep.mubr.bf16.mxu0 %v588
        %643 = vmatmul.mubr.bf16.gmra.mxu0 %v470
        %v644 = vpop.f32.mrf.mxu0
        %v645 = vadd.f32 %v509, %v644
        %v646 = vpop.f32.mrf.mxu0
        %v647 = vpop.f32.mrf.mxu0
        %v648 = vadd.f32 %v509, %v647
        %v649 = vpop.f32.mrf.mxu0
        %650 = vmatprep.mubr.bf16.mxu0 %v591
        %651 = vmatmul.mubr.bf16.gmra.mxu0 %v472
        %v652 = vpop.f32.mrf.mxu0
        %v653 = vadd.f32 %v509, %v652
        %v654 = vpop.f32.mrf.mxu0
        %v655 = vpop.f32.mrf.mxu0
        %v656 = vadd.f32 %v509, %v655
        %v657 = vpop.f32.mrf.mxu0
        %658 = vmatprep.mubr.bf16.mxu0 %v594
        %659 = vmatmul.mubr.bf16.gmra.mxu0 %v474
        %v660 = vpop.f32.mrf.mxu0
        %v661 = vadd.f32 %v509, %v660
        %v662 = vpop.f32.mrf.mxu0
        %v663 = vpop.f32.mrf.mxu0
        %v664 = vadd.f32 %v509, %v663
        %v665 = vpop.f32.mrf.mxu0
        %666 = vmatprep.mubr.bf16.mxu0 %v597
        %667 = vmatmul.mubr.bf16.gmra.mxu0 %v476
        %v668 = vpop.f32.mrf.mxu0
        %v669 = vadd.f32 %v509, %v668
        %v670 = vpop.f32.mrf.mxu0
        %v671 = vpop.f32.mrf.mxu0
        %v672 = vadd.f32 %v509, %v671
        %v673 = vpop.f32.mrf.mxu0
        %674 = vmatprep.mubr.bf16.mxu0 %v600
        %675 = vmatmul.mubr.bf16.gmra.mxu0 %v478
        %v676 = vpop.f32.mrf.mxu0
        %v677 = vadd.f32 %v509, %v676
        %v678 = vpop.f32.mrf.mxu0
        %v679 = vpop.f32.mrf.mxu0
        %v680 = vadd.f32 %v509, %v679
        %v681 = vpop.f32.mrf.mxu0
        %682 = vdwg.mxu0
        %v683 = vxor.u32 %v637, 2147483648
        %v684 = vxor.u32 %v640, 2147483648
        %v685 = vxor.u32 %v645, 2147483648
        %v686 = vxor.u32 %v648, 2147483648
        %v687 = vxor.u32 %v653, 2147483648
        %v688 = vxor.u32 %v656, 2147483648
        %v689 = vxor.u32 %v661, 2147483648
        %v690 = vxor.u32 %v664, 2147483648
        %v691 = vxor.u32 %v669, 2147483648
        %v692 = vxor.u32 %v672, 2147483648
        %v693 = vxor.u32 %v677, 2147483648
        %v694 = vxor.u32 %v680, 2147483648
        %v695 = vmul.f32 %v683, 1.442695
        %v696 = vpow.pop %v695
        %v697 = vmul.f32 %v684, 1.442695
        %v698 = vpow.pop %v697
        %v699 = vmul.f32 %v685, 1.442695
        %v700 = vpow.pop %v699
        %v701 = vmul.f32 %v686, 1.442695
        %v702 = vpow.pop %v701
        %v703 = vmul.f32 %v687, 1.442695
        %v704 = vpow.pop %v703
        %v705 = vmul.f32 %v688, 1.442695
        %v706 = vpow.pop %v705
        %v707 = vmul.f32 %v689, 1.442695
        %v708 = vpow.pop %v707
        %v709 = vmul.f32 %v690, 1.442695
        %v710 = vpow.pop %v709
        %v711 = vmul.f32 %v691, 1.442695
        %v712 = vpow.pop %v711
        %v713 = vmul.f32 %v692, 1.442695
        %v714 = vpow.pop %v713
        %v715 = vmul.f32 %v693, 1.442695
        %v716 = vpow.pop %v715
        %v717 = vmul.f32 %v694, 1.442695
        %v718 = vpow.pop %v717
        %v719 = vadd.f32 %v696, 1.0
        %v720 = vadd.f32 %v698, 1.0
        %v721 = vadd.f32 %v700, 1.0
        %v722 = vadd.f32 %v702, 1.0
        %v723 = vadd.f32 %v704, 1.0
        %v724 = vadd.f32 %v706, 1.0
        %v725 = vadd.f32 %v708, 1.0
        %v726 = vadd.f32 %v710, 1.0
        %v727 = vadd.f32 %v712, 1.0
        %v728 = vadd.f32 %v714, 1.0
        %v729 = vadd.f32 %v716, 1.0
        %v730 = vadd.f32 %v718, 1.0
        %v731 = vrcp.pop %v719
        %v732 = vmul.f32 1.0, %v731
        %v733 = vrcp.pop %v720
        %v734 = vmul.f32 1.0, %v733
        %v735 = vrcp.pop %v721
        %v736 = vmul.f32 1.0, %v735
        %v737 = vrcp.pop %v722
        %v738 = vmul.f32 1.0, %v737
        %v739 = vrcp.pop %v723
        %v740 = vmul.f32 1.0, %v739
        %v741 = vrcp.pop %v724
        %v742 = vmul.f32 1.0, %v741
        %v743 = vrcp.pop %v725
        %v744 = vmul.f32 1.0, %v743
        %v745 = vrcp.pop %v726
        %v746 = vmul.f32 1.0, %v745
        %v747 = vrcp.pop %v727
        %v748 = vmul.f32 1.0, %v747
        %v749 = vrcp.pop %v728
        %v750 = vmul.f32 1.0, %v749
        %v751 = vrcp.pop %v729
        %v752 = vmul.f32 1.0, %v751
        %v753 = vrcp.pop %v730
        %v754 = vmul.f32 1.0, %v753
        %v755 = vld [vmem:[%s5] sm:$0x1]
        %v757 = vlaneseq
        %v758 = vshrl.u32 %v757, 7
        %v759 = vsub.s32 0, %v758
        %v760 = vrot.slane %v755, %v759
        %v762 = vmul.f32 %v732, %v760
        %v763 = vmul.f32 %v734, %v760
        %v764 = vmul.f32 %v736, %v760
        %v765 = vmul.f32 %v738, %v760
        %v766 = vmul.f32 %v740, %v760
        %v767 = vmul.f32 %v742, %v760
        %v768 = vmul.f32 %v744, %v760
        %v769 = vmul.f32 %v746, %v760
        %v770 = vmul.f32 %v748, %v760
        %v771 = vmul.f32 %v750, %v760
        %v772 = vmul.f32 %v752, %v760
        %v773 = vmul.f32 %v754, %v760
        %vm774 = vcmask 130048
        %v775 = vsel %vm774, %v762, 0.0
        %776 = vadd.xlane.f32.xlu0 %v775
        %v777 = vpop.xlane.xlu0 %776
        %v778 = vsel %vm774, %v763, 0.0
        %779 = vadd.xlane.f32.xlu0 %v778
        %v780 = vpop.xlane.xlu0 %779
        %v781 = vsel %vm774, %v764, 0.0
        %782 = vadd.xlane.f32.xlu0 %v781
        %v783 = vpop.xlane.xlu0 %782
        %v784 = vsel %vm774, %v765, 0.0
        %785 = vadd.xlane.f32.xlu0 %v784
        %v786 = vpop.xlane.xlu0 %785
        %v787 = vsel %vm774, %v766, 0.0
        %788 = vadd.xlane.f32.xlu0 %v787
        %v789 = vpop.xlane.xlu0 %788
        %v790 = vsel %vm774, %v767, 0.0
        %791 = vadd.xlane.f32.xlu0 %v790
        %v792 = vpop.xlane.xlu0 %791
        %v793 = vsel %vm774, %v768, 0.0
        %794 = vadd.xlane.f32.xlu0 %v793
        %v795 = vpop.xlane.xlu0 %794
        %v796 = vsel %vm774, %v769, 0.0
        %797 = vadd.xlane.f32.xlu0 %v796
        %v798 = vpop.xlane.xlu0 %797
        %v799 = vsel %vm774, %v770, 0.0
        %800 = vadd.xlane.f32.xlu0 %v799
        %v801 = vpop.xlane.xlu0 %800
        %v802 = vsel %vm774, %v771, 0.0
        %803 = vadd.xlane.f32.xlu0 %v802
        %v804 = vpop.xlane.xlu0 %803
        %v805 = vsel %vm774, %v772, 0.0
        %806 = vadd.xlane.f32.xlu0 %v805
        %v807 = vpop.xlane.xlu0 %806
        %v808 = vsel %vm774, %v773, 0.0
        %809 = vadd.xlane.f32.xlu0 %v808
        %v810 = vpop.xlane.xlu0 %809
        %823 = vrot.lane.b32.xlu0 %v762, 112
        %v824 = vpop.permute.xlu0 %823
        %825 = vrot.lane.b32.xlu0 %v763, 112
        %v826 = vpop.permute.xlu0 %825
        %827 = vrot.lane.b32.xlu0 %v764, 112
        %v828 = vpop.permute.xlu0 %827
        %829 = vrot.lane.b32.xlu0 %v765, 112
        %v830 = vpop.permute.xlu0 %829
        %831 = vrot.lane.b32.xlu0 %v766, 112
        %v832 = vpop.permute.xlu0 %831
        %833 = vrot.lane.b32.xlu0 %v767, 112
        %v834 = vpop.permute.xlu0 %833
        %835 = vrot.lane.b32.xlu0 %v768, 112
        %v836 = vpop.permute.xlu0 %835
        %837 = vrot.lane.b32.xlu0 %v769, 112
        %v838 = vpop.permute.xlu0 %837
        %839 = vrot.lane.b32.xlu0 %v770, 112
        %v840 = vpop.permute.xlu0 %839
        %841 = vrot.lane.b32.xlu0 %v771, 112
        %v842 = vpop.permute.xlu0 %841
        %843 = vrot.lane.b32.xlu0 %v772, 112
        %v844 = vpop.permute.xlu0 %843
        %845 = vrot.lane.b32.xlu0 %v773, 112
        %v846 = vpop.permute.xlu0 %845
        %v859 = vsel %vm774, %v824, 0.0
        %860 = vadd.xlane.f32.xlu0 %v859
        %v861 = vpop.xlane.xlu0 %860
        %v862 = vsel %vm774, %v826, 0.0
        %863 = vadd.xlane.f32.xlu0 %v862
        %v864 = vpop.xlane.xlu0 %863
        %v865 = vsel %vm774, %v828, 0.0
        %866 = vadd.xlane.f32.xlu0 %v865
        %v867 = vpop.xlane.xlu0 %866
        %v868 = vsel %vm774, %v830, 0.0
        %869 = vadd.xlane.f32.xlu0 %v868
        %v870 = vpop.xlane.xlu0 %869
        %v871 = vsel %vm774, %v832, 0.0
        %872 = vadd.xlane.f32.xlu0 %v871
        %v873 = vpop.xlane.xlu0 %872
        %v874 = vsel %vm774, %v834, 0.0
        %875 = vadd.xlane.f32.xlu0 %v874
        %v876 = vpop.xlane.xlu0 %875
        %v877 = vsel %vm774, %v836, 0.0
        %878 = vadd.xlane.f32.xlu0 %v877
        %v879 = vpop.xlane.xlu0 %878
        %v880 = vsel %vm774, %v838, 0.0
        %881 = vadd.xlane.f32.xlu0 %v880
        %v882 = vpop.xlane.xlu0 %881
        %v883 = vsel %vm774, %v840, 0.0
        %884 = vadd.xlane.f32.xlu0 %v883
        %v885 = vpop.xlane.xlu0 %884
        %v886 = vsel %vm774, %v842, 0.0
        %887 = vadd.xlane.f32.xlu0 %v886
        %v888 = vpop.xlane.xlu0 %887
        %v889 = vsel %vm774, %v844, 0.0
        %890 = vadd.xlane.f32.xlu0 %v889
        %v891 = vpop.xlane.xlu0 %890
        %v892 = vsel %vm774, %v846, 0.0
        %893 = vadd.xlane.f32.xlu0 %v892
        %v894 = vpop.xlane.xlu0 %893
        %vm895 = vcmask 7168
        %v896 = vsel %vm895, %v777, %v861
        %v897 = vsel %vm895, %v780, %v864
        %v898 = vsel %vm895, %v783, %v867
        %v899 = vsel %vm895, %v786, %v870
        %v900 = vsel %vm895, %v789, %v873
        %v901 = vsel %vm895, %v792, %v876
        %v902 = vsel %vm895, %v795, %v879
        %v903 = vsel %vm895, %v798, %v882
        %v904 = vsel %vm895, %v801, %v885
        %v905 = vsel %vm895, %v804, %v888
        %v906 = vsel %vm895, %v807, %v891
        %v907 = vsel %vm895, %v810, %v894
        %909 = vset.pattern.permute.xlu0 0
        %910 = vperm.xlu0 %909, %v278
        %v911 = vpop.permute.xlu0 %910
        %914 = vset.pattern.permute.xlu0 0
        %915 = vperm.xlu0 %914, %v279
        %v916 = vpop.permute.xlu0 %915
        %919 = vset.pattern.permute.xlu0 0
        %920 = vperm.xlu0 %919, %v280
        %v921 = vpop.permute.xlu0 %920
        %924 = vset.pattern.permute.xlu0 0
        %925 = vperm.xlu0 %924, %v281
        %v926 = vpop.permute.xlu0 %925
        %929 = vset.pattern.permute.xlu0 0
        %930 = vperm.xlu0 %929, %v282
        %v931 = vpop.permute.xlu0 %930
        %934 = vset.pattern.permute.xlu0 0
        %935 = vperm.xlu0 %934, %v283
        %v936 = vpop.permute.xlu0 %935
        %939 = vset.pattern.permute.xlu0 0
        %940 = vperm.xlu0 %939, %v284
        %v941 = vpop.permute.xlu0 %940
        %944 = vset.pattern.permute.xlu0 0
        %945 = vperm.xlu0 %944, %v285
        %v946 = vpop.permute.xlu0 %945
        %949 = vset.pattern.permute.xlu0 0
        %950 = vperm.xlu0 %949, %v286
        %v951 = vpop.permute.xlu0 %950
        %954 = vset.pattern.permute.xlu0 0
        %955 = vperm.xlu0 %954, %v287
        %v956 = vpop.permute.xlu0 %955
        %959 = vset.pattern.permute.xlu0 0
        %960 = vperm.xlu0 %959, %v288
        %v961 = vpop.permute.xlu0 %960
        %964 = vset.pattern.permute.xlu0 0
        %965 = vperm.xlu0 %964, %v289
        %v966 = vpop.permute.xlu0 %965
        %v968 = vmul.f32 %v896, %v911
        %v969 = vmul.f32 %v897, %v916
        %v970 = vmul.f32 %v898, %v921
        %v971 = vmul.f32 %v899, %v926
        %v972 = vmul.f32 %v900, %v931
        %v973 = vmul.f32 %v901, %v936
        %v974 = vmul.f32 %v902, %v941
        %v975 = vmul.f32 %v903, %v946
        %v976 = vmul.f32 %v904, %v951
        %v977 = vmul.f32 %v905, %v956
        %v978 = vmul.f32 %v906, %v961
        %v979 = vmul.f32 %v907, %v966
        %vm980 = vcmask 277760
        %v981 = vsel %vm980, %v637, -inf
        %982 = vmax.xlane.f32.xlu0 %v981
        %v983 = vpop.xlane.xlu0 %982
        %v984 = vsel %vm980, %v640, -inf
        %985 = vmax.xlane.f32.xlu0 %v984
        %v986 = vpop.xlane.xlu0 %985
        %v987 = vsel %vm980, %v645, -inf
        %988 = vmax.xlane.f32.xlu0 %v987
        %v989 = vpop.xlane.xlu0 %988
        %v990 = vsel %vm980, %v648, -inf
        %991 = vmax.xlane.f32.xlu0 %v990
        %v992 = vpop.xlane.xlu0 %991
        %v993 = vsel %vm980, %v653, -inf
        %994 = vmax.xlane.f32.xlu0 %v993
        %v995 = vpop.xlane.xlu0 %994
        %v996 = vsel %vm980, %v656, -inf
        %997 = vmax.xlane.f32.xlu0 %v996
        %v998 = vpop.xlane.xlu0 %997
        %v999 = vsel %vm980, %v661, -inf
        %1000 = vmax.xlane.f32.xlu0 %v999
        %v1001 = vpop.xlane.xlu0 %1000
        %v1002 = vsel %vm980, %v664, -inf
        %1003 = vmax.xlane.f32.xlu0 %v1002
        %v1004 = vpop.xlane.xlu0 %1003
        %v1005 = vsel %vm980, %v669, -inf
        %1006 = vmax.xlane.f32.xlu0 %v1005
        %v1007 = vpop.xlane.xlu0 %1006
        %v1008 = vsel %vm980, %v672, -inf
        %1009 = vmax.xlane.f32.xlu0 %v1008
        %v1010 = vpop.xlane.xlu0 %1009
        %v1011 = vsel %vm980, %v677, -inf
        %1012 = vmax.xlane.f32.xlu0 %v1011
        %v1013 = vpop.xlane.xlu0 %1012
        %v1014 = vsel %vm980, %v680, -inf
        %1015 = vmax.xlane.f32.xlu0 %v1014
        %v1016 = vpop.xlane.xlu0 %1015
        %v1017 = vsub.f32 %v637, %v983
        %v1018 = vsub.f32 %v640, %v986
        %v1019 = vsub.f32 %v645, %v989
        %v1020 = vsub.f32 %v648, %v992
        %v1021 = vsub.f32 %v653, %v995
        %v1022 = vsub.f32 %v656, %v998
        %v1023 = vsub.f32 %v661, %v1001
        %v1024 = vsub.f32 %v664, %v1004
        %v1025 = vsub.f32 %v669, %v1007
        %v1026 = vsub.f32 %v672, %v1010
        %v1027 = vsub.f32 %v677, %v1013
        %v1028 = vsub.f32 %v680, %v1016
        %v1029 = vmul.f32 %v1017, 1.442695
        %v1030 = vpow.pop %v1029
        %v1031 = vmul.f32 %v1018, 1.442695
        %v1032 = vpow.pop %v1031
        %v1033 = vmul.f32 %v1019, 1.442695
        %v1034 = vpow.pop %v1033
        %v1035 = vmul.f32 %v1020, 1.442695
        %v1036 = vpow.pop %v1035
        %v1037 = vmul.f32 %v1021, 1.442695
        %v1038 = vpow.pop %v1037
        %v1039 = vmul.f32 %v1022, 1.442695
        %v1040 = vpow.pop %v1039
        %v1041 = vmul.f32 %v1023, 1.442695
        %v1042 = vpow.pop %v1041
        %v1043 = vmul.f32 %v1024, 1.442695
        %v1044 = vpow.pop %v1043
        %v1045 = vmul.f32 %v1025, 1.442695
        %v1046 = vpow.pop %v1045
        %v1047 = vmul.f32 %v1026, 1.442695
        %v1048 = vpow.pop %v1047
        %v1049 = vmul.f32 %v1027, 1.442695
        %v1050 = vpow.pop %v1049
        %v1051 = vmul.f32 %v1028, 1.442695
        %v1052 = vpow.pop %v1051
        %1065 = vrot.lane.b32.xlu0 %v1030, 96
        %v1066 = vpop.permute.xlu0 %1065
        %1067 = vrot.lane.b32.xlu0 %v1032, 96
        %v1068 = vpop.permute.xlu0 %1067
        %1069 = vrot.lane.b32.xlu0 %v1034, 96
        %v1070 = vpop.permute.xlu0 %1069
        %1071 = vrot.lane.b32.xlu0 %v1036, 96
        %v1072 = vpop.permute.xlu0 %1071
        %1073 = vrot.lane.b32.xlu0 %v1038, 96
        %v1074 = vpop.permute.xlu0 %1073
        %1075 = vrot.lane.b32.xlu0 %v1040, 96
        %v1076 = vpop.permute.xlu0 %1075
        %1077 = vrot.lane.b32.xlu0 %v1042, 96
        %v1078 = vpop.permute.xlu0 %1077
        %1079 = vrot.lane.b32.xlu0 %v1044, 96
        %v1080 = vpop.permute.xlu0 %1079
        %1081 = vrot.lane.b32.xlu0 %v1046, 96
        %v1082 = vpop.permute.xlu0 %1081
        %1083 = vrot.lane.b32.xlu0 %v1048, 96
        %v1084 = vpop.permute.xlu0 %1083
        %1085 = vrot.lane.b32.xlu0 %v1050, 96
        %v1086 = vpop.permute.xlu0 %1085
        %1087 = vrot.lane.b32.xlu0 %v1052, 96
        %v1088 = vpop.permute.xlu0 %1087
        %vm1101 = vcmask 15360
        %v1102 = vsel %vm1101, %v1066, 0.0
        %1103 = vadd.xlane.f32.xlu0 %v1102
        %v1104 = vpop.xlane.xlu0 %1103
        %v1105 = vsel %vm1101, %v1068, 0.0
        %1106 = vadd.xlane.f32.xlu0 %v1105
        %v1107 = vpop.xlane.xlu0 %1106
        %v1108 = vsel %vm1101, %v1070, 0.0
        %1109 = vadd.xlane.f32.xlu0 %v1108
        %v1110 = vpop.xlane.xlu0 %1109
        %v1111 = vsel %vm1101, %v1072, 0.0
        %1112 = vadd.xlane.f32.xlu0 %v1111
        %v1113 = vpop.xlane.xlu0 %1112
        %v1114 = vsel %vm1101, %v1074, 0.0
        %1115 = vadd.xlane.f32.xlu0 %v1114
        %v1116 = vpop.xlane.xlu0 %1115
        %v1117 = vsel %vm1101, %v1076, 0.0
        %1118 = vadd.xlane.f32.xlu0 %v1117
        %v1119 = vpop.xlane.xlu0 %1118
        %v1120 = vsel %vm1101, %v1078, 0.0
        %1121 = vadd.xlane.f32.xlu0 %v1120
        %v1122 = vpop.xlane.xlu0 %1121
        %v1123 = vsel %vm1101, %v1080, 0.0
        %1124 = vadd.xlane.f32.xlu0 %v1123
        %v1125 = vpop.xlane.xlu0 %1124
        %v1126 = vsel %vm1101, %v1082, 0.0
        %1127 = vadd.xlane.f32.xlu0 %v1126
        %v1128 = vpop.xlane.xlu0 %1127
        %v1129 = vsel %vm1101, %v1084, 0.0
        %1130 = vadd.xlane.f32.xlu0 %v1129
        %v1131 = vpop.xlane.xlu0 %1130
        %v1132 = vsel %vm1101, %v1086, 0.0
        %1133 = vadd.xlane.f32.xlu0 %v1132
        %v1134 = vpop.xlane.xlu0 %1133
        %v1135 = vsel %vm1101, %v1088, 0.0
        %1136 = vadd.xlane.f32.xlu0 %v1135
        %v1137 = vpop.xlane.xlu0 %1136
        %v1138 = vrcp.pop %v1104
        %v1139 = vrcp.pop %v1107
        %v1140 = vrcp.pop %v1110
        %v1141 = vrcp.pop %v1113
        %v1142 = vrcp.pop %v1116
        %v1143 = vrcp.pop %v1119
        %v1144 = vrcp.pop %v1122
        %v1145 = vrcp.pop %v1125
        %v1146 = vrcp.pop %v1128
        %v1147 = vrcp.pop %v1131
        %v1148 = vrcp.pop %v1134
        %v1149 = vrcp.pop %v1137
        %v1150 = vmul.f32 %v1030, %v1138
        %v1151 = vmul.f32 %v1032, %v1139
        %v1152 = vmul.f32 %v1034, %v1140
        %v1153 = vmul.f32 %v1036, %v1141
        %v1154 = vmul.f32 %v1038, %v1142
        %v1155 = vmul.f32 %v1040, %v1143
        %v1156 = vmul.f32 %v1042, %v1144
        %v1157 = vmul.f32 %v1044, %v1145
        %v1158 = vmul.f32 %v1046, %v1146
        %v1159 = vmul.f32 %v1048, %v1147
        %v1160 = vmul.f32 %v1050, %v1148
        %v1161 = vmul.f32 %v1052, %v1149
        %1174 = vrot.lane.b32.xlu0 %v968, 32
        %v1175 = vpop.permute.xlu0 %1174
        %1176 = vrot.lane.b32.xlu0 %v969, 32
        %v1177 = vpop.permute.xlu0 %1176
        %1178 = vrot.lane.b32.xlu0 %v970, 32
        %v1179 = vpop.permute.xlu0 %1178
        %1180 = vrot.lane.b32.xlu0 %v971, 32
        %v1181 = vpop.permute.xlu0 %1180
        %1182 = vrot.lane.b32.xlu0 %v972, 32
        %v1183 = vpop.permute.xlu0 %1182
        %1184 = vrot.lane.b32.xlu0 %v973, 32
        %v1185 = vpop.permute.xlu0 %1184
        %1186 = vrot.lane.b32.xlu0 %v974, 32
        %v1187 = vpop.permute.xlu0 %1186
        %1188 = vrot.lane.b32.xlu0 %v975, 32
        %v1189 = vpop.permute.xlu0 %1188
        %1190 = vrot.lane.b32.xlu0 %v976, 32
        %v1191 = vpop.permute.xlu0 %1190
        %1192 = vrot.lane.b32.xlu0 %v977, 32
        %v1193 = vpop.permute.xlu0 %1192
        %1194 = vrot.lane.b32.xlu0 %v978, 32
        %v1195 = vpop.permute.xlu0 %1194
        %1196 = vrot.lane.b32.xlu0 %v979, 32
        %v1197 = vpop.permute.xlu0 %1196
        %v1210 = vmul.f32 %v1150, %v1175
        %v1211 = vmul.f32 %v1151, %v1177
        %v1212 = vmul.f32 %v1152, %v1179
        %v1213 = vmul.f32 %v1153, %v1181
        %v1214 = vmul.f32 %v1154, %v1183
        %v1215 = vmul.f32 %v1155, %v1185
        %v1216 = vmul.f32 %v1156, %v1187
        %v1217 = vmul.f32 %v1157, %v1189
        %v1218 = vmul.f32 %v1158, %v1191
        %v1219 = vmul.f32 %v1159, %v1193
        %v1220 = vmul.f32 %v1160, %v1195
        %v1221 = vmul.f32 %v1161, %v1197
        %1234 = vrot.lane.b32.xlu0 %v1210, 96
        %v1235 = vpop.permute.xlu0 %1234
        %1236 = vrot.lane.b32.xlu0 %v1211, 96
        %v1237 = vpop.permute.xlu0 %1236
        %1238 = vrot.lane.b32.xlu0 %v1212, 96
        %v1239 = vpop.permute.xlu0 %1238
        %1240 = vrot.lane.b32.xlu0 %v1213, 96
        %v1241 = vpop.permute.xlu0 %1240
        %1242 = vrot.lane.b32.xlu0 %v1214, 96
        %v1243 = vpop.permute.xlu0 %1242
        %1244 = vrot.lane.b32.xlu0 %v1215, 96
        %v1245 = vpop.permute.xlu0 %1244
        %1246 = vrot.lane.b32.xlu0 %v1216, 96
        %v1247 = vpop.permute.xlu0 %1246
        %1248 = vrot.lane.b32.xlu0 %v1217, 96
        %v1249 = vpop.permute.xlu0 %1248
        %1250 = vrot.lane.b32.xlu0 %v1218, 96
        %v1251 = vpop.permute.xlu0 %1250
        %1252 = vrot.lane.b32.xlu0 %v1219, 96
        %v1253 = vpop.permute.xlu0 %1252
        %1254 = vrot.lane.b32.xlu0 %v1220, 96
        %v1255 = vpop.permute.xlu0 %1254
        %1256 = vrot.lane.b32.xlu0 %v1221, 96
        %v1257 = vpop.permute.xlu0 %1256
        %v1270 = vsel %vm1101, %v1235, 0.0
        %1271 = vadd.xlane.f32.xlu0 %v1270
        %v1272 = vpop.xlane.xlu0 %1271
        %v1273 = vsel %vm1101, %v1237, 0.0
        %1274 = vadd.xlane.f32.xlu0 %v1273
        %v1275 = vpop.xlane.xlu0 %1274
        %v1276 = vsel %vm1101, %v1239, 0.0
        %1277 = vadd.xlane.f32.xlu0 %v1276
        %v1278 = vpop.xlane.xlu0 %1277
        %v1279 = vsel %vm1101, %v1241, 0.0
        %1280 = vadd.xlane.f32.xlu0 %v1279
        %v1281 = vpop.xlane.xlu0 %1280
        %v1282 = vsel %vm1101, %v1243, 0.0
        %1283 = vadd.xlane.f32.xlu0 %v1282
        %v1284 = vpop.xlane.xlu0 %1283
        %v1285 = vsel %vm1101, %v1245, 0.0
        %1286 = vadd.xlane.f32.xlu0 %v1285
        %v1287 = vpop.xlane.xlu0 %1286
        %v1288 = vsel %vm1101, %v1247, 0.0
        %1289 = vadd.xlane.f32.xlu0 %v1288
        %v1290 = vpop.xlane.xlu0 %1289
        %v1291 = vsel %vm1101, %v1249, 0.0
        %1292 = vadd.xlane.f32.xlu0 %v1291
        %v1293 = vpop.xlane.xlu0 %1292
        %v1294 = vsel %vm1101, %v1251, 0.0
        %1295 = vadd.xlane.f32.xlu0 %v1294
        %v1296 = vpop.xlane.xlu0 %1295
        %v1297 = vsel %vm1101, %v1253, 0.0
        %1298 = vadd.xlane.f32.xlu0 %v1297
        %v1299 = vpop.xlane.xlu0 %1298
        %v1300 = vsel %vm1101, %v1255, 0.0
        %1301 = vadd.xlane.f32.xlu0 %v1300
        %v1302 = vpop.xlane.xlu0 %1301
        %v1303 = vsel %vm1101, %v1257, 0.0
        %1304 = vadd.xlane.f32.xlu0 %v1303
        %v1305 = vpop.xlane.xlu0 %1304
        %1318 = vrot.lane.b32.xlu0 %v1150, 2
        %v1319 = vpop.permute.xlu0 %1318
        %1320 = vrot.lane.b32.xlu0 %v1151, 2
        %v1321 = vpop.permute.xlu0 %1320
        %1322 = vrot.lane.b32.xlu0 %v1152, 2
        %v1323 = vpop.permute.xlu0 %1322
        %1324 = vrot.lane.b32.xlu0 %v1153, 2
        %v1325 = vpop.permute.xlu0 %1324
        %1326 = vrot.lane.b32.xlu0 %v1154, 2
        %v1327 = vpop.permute.xlu0 %1326
        %1328 = vrot.lane.b32.xlu0 %v1155, 2
        %v1329 = vpop.permute.xlu0 %1328
        %1330 = vrot.lane.b32.xlu0 %v1156, 2
        %v1331 = vpop.permute.xlu0 %1330
        %1332 = vrot.lane.b32.xlu0 %v1157, 2
        %v1333 = vpop.permute.xlu0 %1332
        %1334 = vrot.lane.b32.xlu0 %v1158, 2
        %v1335 = vpop.permute.xlu0 %1334
        %1336 = vrot.lane.b32.xlu0 %v1159, 2
        %v1337 = vpop.permute.xlu0 %1336
        %1338 = vrot.lane.b32.xlu0 %v1160, 2
        %v1339 = vpop.permute.xlu0 %1338
        %1340 = vrot.lane.b32.xlu0 %v1161, 2
        %v1341 = vpop.permute.xlu0 %1340
        %v1354 = vsel %vm332, %v732, %v1175
        %v1355 = vsel %vm332, %v734, %v1177
        %v1356 = vsel %vm332, %v736, %v1179
        %v1357 = vsel %vm332, %v738, %v1181
        %v1358 = vsel %vm332, %v740, %v1183
        %v1359 = vsel %vm332, %v742, %v1185
        %v1360 = vsel %vm332, %v744, %v1187
        %v1361 = vsel %vm332, %v746, %v1189
        %v1362 = vsel %vm332, %v748, %v1191
        %v1363 = vsel %vm332, %v750, %v1193
        %v1364 = vsel %vm332, %v752, %v1195
        %v1365 = vsel %vm332, %v754, %v1197
        %vm1366 = vcmask 277504
        %v1367 = vsel %vm1366, %v1354, %v1319
        %v1368 = vsel %vm1366, %v1355, %v1321
        %v1369 = vsel %vm1366, %v1356, %v1323
        %v1370 = vsel %vm1366, %v1357, %v1325
        %v1371 = vsel %vm1366, %v1358, %v1327
        %v1372 = vsel %vm1366, %v1359, %v1329
        %v1373 = vsel %vm1366, %v1360, %v1331
        %v1374 = vsel %vm1366, %v1361, %v1333
        %v1375 = vsel %vm1366, %v1362, %v1335
        %v1376 = vsel %vm1366, %v1363, %v1337
        %v1377 = vsel %vm1366, %v1364, %v1339
        %v1378 = vsel %vm1366, %v1365, %v1341
        %vm1379 = vcmask 293888
        %v1380 = vsel %vm1379, %v1367, %v1272
        %v1381 = vsel %vm1379, %v1368, %v1275
        %v1382 = vsel %vm1379, %v1369, %v1278
        %v1383 = vsel %vm1379, %v1370, %v1281
        %v1384 = vsel %vm1379, %v1371, %v1284
        %v1385 = vsel %vm1379, %v1372, %v1287
        %v1386 = vsel %vm1379, %v1373, %v1290
        %v1387 = vsel %vm1379, %v1374, %v1293
        %v1388 = vsel %vm1379, %v1375, %v1296
        %v1389 = vsel %vm1379, %v1376, %v1299
        %v1390 = vsel %vm1379, %v1377, %v1302
        %v1391 = vsel %vm1379, %v1378, %v1305
        %vm1392 = vcmask 302080
        %v1393 = vsel %vm1392, %v1380, 0.0
        %v1394 = vsel %vm1392, %v1381, 0.0
        %v1395 = vsel %vm1392, %v1382, 0.0
        %v1396 = vsel %vm1392, %v1383, 0.0
        %v1397 = vsel %vm1392, %v1384, 0.0
        %v1398 = vsel %vm1392, %v1385, 0.0
        %v1399 = vsel %vm1392, %v1386, 0.0
        %v1400 = vsel %vm1392, %v1387, 0.0
        %v1401 = vsel %vm1392, %v1388, 0.0
        %v1402 = vsel %vm1392, %v1389, 0.0
        %v1403 = vsel %vm1392, %v1390, 0.0
        %v1404 = vsel %vm1392, %v1391, 0.0
        %v1405 = vpack.c.bf16 %v1394, %v1393
        %v1406 = vpack.c.bf16 %v1396, %v1395
        %v1407 = vpack.c.bf16 %v1398, %v1397
        %v1408 = vpack.c.bf16 %v1400, %v1399
        %v1409 = vpack.c.bf16 %v1402, %v1401
        %v1410 = vpack.c.bf16 %v1404, %v1403
        %v1417 = vunpack.c.l.b16 %v1405
        %v1418 = vunpack.c.h.b16 %v1405
        %v1419 = vunpack.c.l.b16 %v1406
        %v1420 = vunpack.c.h.b16 %v1406
        %v1421 = vunpack.c.l.b16 %v1407
        %v1422 = vunpack.c.h.b16 %v1407
        %v1423 = vunpack.c.l.b16 %v1408
        %v1424 = vunpack.c.h.b16 %v1408
        %v1425 = vunpack.c.l.b16 %v1409
        %v1426 = vunpack.c.h.b16 %v1409
        %v1427 = vunpack.c.l.b16 %v1410
        %v1428 = vunpack.c.h.b16 %v1410
        %v1429 = vpack.c.b16 %v1417, %v1417
        %v1430 = vpack.c.b16 %v1418, %v1418
        %v1431 = vpack.c.b16 %v1419, %v1419
        %v1432 = vpack.c.b16 %v1420, %v1420
        %v1433 = vpack.c.b16 %v1421, %v1421
        %v1434 = vpack.c.b16 %v1422, %v1422
        %v1435 = vpack.c.b16 %v1423, %v1423
        %v1436 = vpack.c.b16 %v1424, %v1424
        %v1437 = vpack.c.b16 %v1425, %v1425
        %v1438 = vpack.c.b16 %v1426, %v1426
        %v1439 = vpack.c.b16 %v1427, %v1427
        %v1440 = vpack.c.b16 %v1428, %v1428
        %1453 = vst [vmem:[%s257] sm:$0xf] %v1429
        %1454 = vst [vmem:[%s257 + $0x4] sm:$0xf] %v1430
        %1455 = vst [vmem:[%s257 + $0x8] sm:$0xf] %v1431
        %1456 = vst [vmem:[%s257 + $0xc] sm:$0xf] %v1432
        %1457 = vst [vmem:[%s257 + $0x10] sm:$0xf] %v1433
        %1458 = vst [vmem:[%s257 + $0x14] sm:$0xf] %v1434
        %1459 = vst [vmem:[%s257 + $0x18] sm:$0xf] %v1435
        %1460 = vst [vmem:[%s257 + $0x1c] sm:$0xf] %v1436
        %1461 = vst [vmem:[%s257 + $0x20] sm:$0xf] %v1437
        %1462 = vst [vmem:[%s257 + $0x24] sm:$0xf] %v1438
        %1463 = vst [vmem:[%s257 + $0x28] sm:$0xf] %v1439
        %1464 = vst [vmem:[%s257 + $0x2c] sm:$0xf] %v1440
        %s1465 = sand.u32 %s159, 1
        %s1466 = scalar_lea.sflag [#allocation3], %s1465
        %s1467 = sand.u32 %s159, 1
        %s1468 = smul.addr %s1467, 48
        %s1469 = scalar_lea.vmem [#allocation2], %s1468
        // Predicated region
        $region45: #{tpu_custom_call.1} parent=43 // pred_check
          %p1470 = pneg %p169
        $region46: #{tpu_custom_call.1} parent=43 // pred_check_branch
          %1472 = sbr.rel (%p1470) target = $region48
        $region47: #{tpu_custom_call.1} parent=43 // pred_region
          %s1473 = smul.u32 12, %s20
          %s1474 = ssub.s32 17, %s1473
          %p1475 = scmp.lt.s32.totalorder %s1474, 12
          %s1476 = scalar_select %p1475, %s1474, 12
          %s1477 = smul.u32 64, %s1476
          %s1479 = ssub.s32 768, %s1477
          %1480 = vsyncadd %s1466, %s1479
          %p1481 = scmp.ne.s32.totalorder 0, %s1477
          %s1482 = smul.addr %s1473, 64
          %s1483 = scalar_lea.hbm %s6, %s1482
          %s1484 = smul.u32 4, %s1476
          %s1485 = sshll.u32 %s1469, 4
          %s1486 = int_to_ptr.vmem [resolvable:$true] %s1485
          %s1487 = sshll.u32 %s1484, 4
          %1491 = dma.vmem_to_hbm [thread:$0]  (%p1481), %s1486, %s1487, %s1483, %s1466, 64, 64, 4
        $region48: #{tpu_custom_call.1} parent=43 // pred_fallthru
          _
      $region44: #{tpu_custom_call.1} parent=5 // pred_fallthru
        _
      %p1492 = scmp.le.s32.totalorder 2, %s15
      // Predicated region
      $region49: #{tpu_custom_call.1} parent=5 // pred_check
        %p1493 = pneg %p1492
      $region50: #{tpu_custom_call.1} parent=5 // pred_check_branch
        %1495 = sbr.rel (%p1493) target = $region52
      $region51: #{tpu_custom_call.1} parent=5 // pred_region
        %s1496 = ssub.s32 %s15, 2
        // Predicated region
        $region53: #{tpu_custom_call.1} parent=51 // pred_check
          %p1497 = pneg %p175
        $region54: #{tpu_custom_call.1} parent=51 // pred_check_branch
          %1499 = sbr.rel (%p1497) target = $region56
        $region55: #{tpu_custom_call.1} parent=51 // pred_region
          %s1500 = sand.u32 %s160, 1
          %s1501 = scalar_lea.sflag [#allocation3], %s1500
          %s1502 = sand.u32 %s160, 1
          %s1503 = smul.addr %s1502, 48
          %s1504 = scalar_lea.vmem [#allocation2], %s1503
          %1505 = dma.done %s1501, 768
        $region56: #{tpu_custom_call.1} parent=51 // pred_fallthru
          _
      $region52: #{tpu_custom_call.1} parent=5 // pred_fallthru
        _
    $region6: #{tpu_custom_call.1} parent=1 // loop_footer
      %s19 = sadd.s32 1, %s15
    $region7: #{tpu_custom_call.1} parent=1 // loop_footer_branch
      %14 = sbr.rel target = $region3
    $region8: #{tpu_custom_call.1} parent=1 // loop_exit
      _
    %1506 = vsyncpa [#allocation3], 1
    %s1507 = scalar_lea.sflag [#allocation3], 1
    %1508 = vsyncpa %s1507, 1

</llo_original>
